<compile_context>
chip_gen: v7x
topology: tpu7x:2x2x1
jax: 0.10.0
libtpu: 0.0.40
codegen_flags: <defaults>
</compile_context>

<pallas_src>
import functools

import jax
import jax.numpy as jnp
from jax import lax
from jax.experimental import pallas as pl
from jax.experimental.pallas import tpu as pltpu


# ---------------------------------------------------------------------------
# Layout glue (pure JAX): single-channel k x k tap gathering, pixels-on-lanes.
# ---------------------------------------------------------------------------
# TODO(synk): the tap gather could move in-kernel with halo'd spatial slabs
# (manual make_async_copy of padded row blocks); kept in the wrapper for
# robustness, stored bf16 to halve its HBM traffic.
def _im2col1(x, ksize, pad):
    """x: (B, 1, H, W) -> (ksize*ksize, B*H*W); tap rows ordered (kh, kw)."""
    b, c, H, W = x.shape
    assert c == 1
    xp = jnp.pad(x[:, 0], ((0, 0), (pad, pad), (pad, pad)))
    taps = [xp[:, i:i + H, j:j + W] for i in range(ksize) for j in range(ksize)]
    return jnp.stack(taps, axis=0).reshape(ksize * ksize, b * H * W)


def _round_up(x, m):
    return -(-x // m) * m


def _choose_grid(M, target=1024):
    """(lane_tile, n_steps): large tiles amortize the ~0.35us/step overhead,
    grid=1 is allowed for small M (v5e/v6e have a single TensorCore), and the
    step count is rounded up to an even number when > 1 so the two v7x
    TensorCores split the 'parallel' axis evenly."""
    tm = min(target, _round_up(M, 128))
    ng = pl.cdiv(M, tm)
    if ng > 1 and ng % 2:
        ng += 1
    return tm, ng


def _pad_lanes(x, Mp):
    M = x.shape[-1]
    if Mp != M:
        x = jnp.pad(x, ((0, 0), (0, Mp - M)))
    return x


def _softshrink1(x):
    return jnp.where(x > 1.0, x - 1.0, jnp.where(x < -1.0, x + 1.0, 0.0))


# ---------------------------------------------------------------------------
# Pallas kernel 1: Cout=1 "T" conv as VPU multiply-accumulate + sublane
# reduction (review: a 1-row LHS MXU matmul wastes >99% of the MXU).
#   means (1, tm) = sum_j w[j] * taps[j, :] + b
# ---------------------------------------------------------------------------
def _t_conv_kernel(p_ref, w_ref, b_ref, o_ref):
    taps = p_ref[...].astype(jnp.float32)                      # (K, tm)
    o_ref[...] = jnp.sum(taps * w_ref[...], axis=0, keepdims=True) + b_ref[...]


def t_conv(patches, w_col, b11, tm, ng):
    K, M = patches.shape
    Mp = tm * ng
    pp = _pad_lanes(patches, Mp)
    out = pl.pallas_call(
        _t_conv_kernel,
        out_shape=jax.ShapeDtypeStruct((1, Mp), jnp.float32),
        grid_spec=pltpu.PrefetchScalarGridSpec(
            num_scalar_prefetch=0,
            grid=(ng,),
            in_specs=[pl.BlockSpec((K, tm), lambda i: (0, i)),
                      pl.BlockSpec((K, 1), lambda i: (0, 0)),
                      pl.BlockSpec((1, 1), lambda i: (0, 0))],
            out_specs=pl.BlockSpec((1, tm), lambda i: (0, i))),
        compiler_params=pltpu.CompilerParams(
            dimension_semantics=("parallel",)),
    )(pp, w_col, b11)
    return out[:, :M]


# ---------------------------------------------------------------------------
# Pallas kernel 2: fused SCN core.  Per lane tile (column = one pixel):
#   y = A @ P + b              A = diag(1/theta) C Dy^T Hmat          (n, 9)
#   k x: z = S' @ softshrink(z) + y    S' = diag(1/theta) S diag(theta)
#   q = R @ softshrink(z)      R = G_taps @ (Dx * theta)          (sg*sg, n)
# MXU operands bf16, accumulation f32.
# ---------------------------------------------------------------------------
def _scn_core_kernel(hp_ref, a_ref, ab_ref, s_ref, r_ref, q_ref, *, k):
    y = jnp.dot(a_ref[...], hp_ref[...],
                preferred_element_type=jnp.float32) + ab_ref[...]   # (n, tm) f32
    z = y
    # k is small (<= ~4): static unroll is fine; for larger k switch to
    # lax.fori_loop(..., unroll=True) to bound live ranges (review item).
    for _ in range(k):
        z = jnp.dot(s_ref[...], _softshrink1(z).astype(jnp.bfloat16),
                    preferred_element_type=jnp.float32) + y
    q_ref[...] = jnp.dot(r_ref[...], _softshrink1(z).astype(jnp.bfloat16),
                         preferred_element_type=jnp.float32)        # (sg*sg, tm)


def scn_core(h_patch, a_mat, a_bias, s_fold, r_mat, k, tm, ng):
    Kh, M = h_patch.shape
    n = a_mat.shape[0]
    ntap = r_mat.shape[0]
    Mp = tm * ng
    hp = _pad_lanes(h_patch, Mp)
    out = pl.pallas_call(
        functools.partial(_scn_core_kernel, k=k),
        out_shape=jax.ShapeDtypeStruct((ntap, Mp), jnp.float32),
        grid_spec=pltpu.PrefetchScalarGridSpec(
            num_scalar_prefetch=0,
            grid=(ng,),
            # NOTE: if a profile shows exposed input DMA, add
            # pipeline_mode=pl.Buffered(3) on the patch spec below.
            in_specs=[pl.BlockSpec((Kh, tm), lambda i: (0, i)),
                      pl.BlockSpec((n, Kh), lambda i: (0, 0)),
                      pl.BlockSpec((n, 1), lambda i: (0, 0)),
                      pl.BlockSpec((n, n), lambda i: (0, 0)),
                      pl.BlockSpec((ntap, n), lambda i: (0, 0))],
            out_specs=pl.BlockSpec((ntap, tm), lambda i: (0, i))),
        compiler_params=pltpu.CompilerParams(
            dimension_semantics=("parallel",)),
    )(hp, a_mat, a_bias, s_fold, r_mat)
    return out[:, :M]


# ---------------------------------------------------------------------------
# Full forward (mirrors SCN_Dy.forward)
# ---------------------------------------------------------------------------
def scn_dy_forward(y, p, cfg):
    sy, sg, k = cfg['sy'], cfg['sg'], cfg['k']
    my, n = cfg['my'], cfg['n']
    mx = cfg['sx'] * cfg['sx']
    C = 5
    B, _, H, W = y.shape
    M = B * H * W
    tm, ng = _choose_grid(M)

    # ---- one-time weight folding (pure JAX, outside the hot kernels) -------
    # TODO(synk): for real checkpoints Dy_w/Dx_w must be the weight_norm
    # effective weights (g * v / ||v||); synthetic weights here are direct.
    t = p['theta'].reshape(n).astype(jnp.float32)
    try:
        theta_ok = bool(jnp.all(t > 0.0))
    except Exception:                       # traced under jit: cannot check here
        theta_ok = True
    assert theta_ok, "theta must be strictly positive (softshrink/theta folding)"

    h_mat = p['H_w'].reshape(my, sy * sy).astype(jnp.float32)          # (my, 9)
    wd_t = ((p['Dy_w'] * C) / t[None, :]).T                            # (n, my)
    a_mat = wd_t @ h_mat                                               # (n, 9)
    a_bias = wd_t @ p['H_b'].reshape(my, 1)                            # (n, 1)
    smat = jnp.eye(n, dtype=jnp.float32) - p['Dy_w'].T @ p['Dy_w']     # S.weight
    s_fold = smat * (t[None, :] / t[:, None])                          # diag(1/t) S diag(t)
    d_fold = p['Dx_w'] * t[None, :]                                    # (mx, n)
    g_taps = jnp.transpose(p['G_w'][0], (1, 2, 0)).reshape(sg * sg, mx)
    r_mat = g_taps @ d_fold                                            # (sg*sg, n)

    # ---- means = T(y): tiny Pallas VPU kernel over the sy*sy taps ----------
    t_patch = _im2col1(y, sy, sy // 2).astype(jnp.bfloat16)            # (9, M)
    means_flat = t_conv(t_patch, p['T_w'].reshape(sy * sy, 1),
                        p['T_b'].reshape(1, 1), tm, ng)                # (1, M)
    means_img = means_flat.reshape(B, 1, H, W)

    # ---- fused H -> W -> k-step ISTA -> Dx -> per-tap-G core ---------------
    # (the y - means subtraction fuses into the patch build; no yc intermediate)
    h_patch = _im2col1(y - means_img, sy, sy // 2).astype(jnp.bfloat16)
    q9 = scn_core(h_patch, a_mat.astype(jnp.bfloat16), a_bias,
                  s_fold.astype(jnp.bfloat16), r_mat.astype(jnp.bfloat16),
                  k, tm, ng)                                           # (sg*sg, M)

    # ---- G conv epilogue: shift-and-add the per-tap partial sums -----------
    # TODO(synk): could be a halo'd-slab Pallas stencil; it is one fused XLA
    # pass over (sg*sg + 1) rows/pixel, tiny next to the old (mx*9, M) path.
    pad = sg // 2
    q = q9.reshape(sg * sg, B, H, W)
    qp = jnp.pad(q, ((0, 0), (0, 0), (pad, pad), (pad, pad)))
    out_img = jnp.zeros((B, H, W), jnp.float32)
    for dr in range(sg):
        for dc in range(sg):
            out_img = out_img + qp[dr * sg + dc, :, dr:dr + H, dc:dc + W]
    out_img = out_img + p['G_b'].reshape(1, 1, 1)
    return out_img[:, None, :, :] + means_img


# ---------------------------------------------------------------------------
# Pure-JAX f32 reference mirroring the PyTorch forward (for validation)
# ---------------------------------------------------------------------------
def _ref_forward(y, p, cfg):
    sy, sg, k = cfg['sy'], cfg['sg'], cfg['k']
    n = cfg['n']
    mx = cfg['sx'] * cfg['sx']
    C = 5
    B, _, H, W = y.shape
    dn = ('NCHW', 'OIHW', 'NCHW')

    def conv(x, w, b, pad):
        o = lax.conv_general_dilated(x, w, (1, 1), [(pad, pad), (pad, pad)],
                                     dimension_numbers=dn)
        return o + b.reshape(1, -1, 1, 1)

    means = conv(y, p['T_w'], p['T_b'], sy // 2)
    h = conv(y - means, p['H_w'], p['H_b'], sy // 2)          # (B, my, H, W)
    t = p['theta'].reshape(1, 1, n)
    hp = h.reshape(B, -1, H * W).transpose(0, 2, 1)           # (B, HW, my)
    ycode = (hp @ (p['Dy_w'] * C)) / t                        # (B, HW, n)
    smat = jnp.eye(n, dtype=jnp.float32) - p['Dy_w'].T @ p['Dy_w']
    z = ycode
    for _ in range(k):
        z = ((_softshrink1(z) * t) @ smat.T) / t + ycode
    z = _softshrink1(z) * t
    zx = z @ p['Dx_w'].T                                      # (B, HW, mx)
    zimg = zx.reshape(B, H, W, mx).transpose(0, 3, 1, 2)
    return conv(zimg, p['G_w'], p['G_b'], sg // 2) + means


# ---------------------------------------------------------------------------
# Deterministic synthetic parameters + smoke / accuracy test
# ---------------------------------------------------------------------------
if __name__ == "__main__":
    cfg = dict(my=8, sy=3, n=32, sx=4, sg=3, k=3)
    my, sy, n, sg = cfg['my'], cfg['sy'], cfg['n'], cfg['sg']
    mx = cfg['sx'] * cfg['sx']
    L, C = 5, 5

    key = jax.random.PRNGKey(0)
    ks = jax.random.split(key, 6)
    # TODO(synk): the structured H-filter overwrite and the weight_norm
    # reparameterization are init-time only; synthetic deterministic weights.
    params = {
        'H_w': jax.random.uniform(ks[0], (my, 1, sy, sy), jnp.float32, -0.1, 0.1),
        'H_b': 0.01 * jax.random.normal(ks[1], (my,), dtype=jnp.float32),
        'T_w': jnp.full((1, 1, sy, sy), 1.0 / (sy * sy), jnp.float32),
        'T_b': jnp.zeros((1,), jnp.float32),
        'G_w': jnp.full((1, mx, sg, sg), 1.0 / (sg * sg), jnp.float32),
        'G_b': jnp.zeros((1,), jnp.float32),
        'Dy_w': 0.1 * jax.random.normal(ks[2], (my, n), dtype=jnp.float32),
        'Dx_w': 0.1 * jax.random.normal(ks[3], (mx, n), dtype=jnp.float32) / (L * C),
        'theta': jnp.ones((1, n), jnp.float32),
    }

    x = jax.random.normal(ks[4], (2, 1, 16, 16), dtype=jnp.float32)    # NCHW

    fwd = jax.jit(functools.partial(scn_dy_forward, cfg=cfg))
    out = jax.block_until_ready(fwd(x, params))
    assert out.shape == (2, 1, 16, 16) and out.dtype == jnp.float32
    assert bool(jnp.all(jnp.isfinite(out)))

    ref = _ref_forward(x, params, cfg)
    err = float(jnp.max(jnp.abs(out - ref)))
    assert err < 1e-1, f"mismatch vs f32 reference: max|diff|={err}"
    print("KERNEL_OK")
</pallas_src>

<mosaic_0001>
module attributes {stable_mosaic.version = 11 : i64} {
  func.func @_t_conv_kernel(%arg0: i32, %arg1: memref<9x512xbf16, #tpu.memory_space<vmem>>, %arg2: memref<9x1xf32, #tpu.memory_space<vmem>>, %arg3: memref<1x1xf32, #tpu.memory_space<vmem>>, %arg4: memref<1x512xf32, #tpu.memory_space<vmem>>) attributes {dimension_semantics = [#tpu.dimension_semantics<parallel>], iteration_bounds = array<i64: 1>, scalar_prefetch = 0 : i64, scratch_operands = 0 : i64, tpu.core_type = #tpu.core_type<tc>, window_params = [{transform_indices = @transform_0, window_bounds = array<i64: 9, 512>}, {pipeline_mode = #tpu.pipeline_mode<synchronous>, transform_indices = @transform_1, window_bounds = array<i64: 9, 1>}, {pipeline_mode = #tpu.pipeline_mode<synchronous>, transform_indices = @transform_2, window_bounds = array<i64: 1, 1>}, {transform_indices = @transform_3, window_bounds = array<i64: 1, 512>}]} {
    %c0 = arith.constant 0 : index
    %c0_0 = arith.constant 0 : index
    %0 = vector.load %arg1[%c0, %c0_0] : memref<9x512xbf16, #tpu.memory_space<vmem>>, vector<9x512xbf16>
    %1 = arith.extf %0 : vector<9x512xbf16> to vector<9x512xf32>
    %c0_1 = arith.constant 0 : index
    %c0_2 = arith.constant 0 : index
    %2 = vector.load %arg2[%c0_1, %c0_2] : memref<9x1xf32, #tpu.memory_space<vmem>>, vector<9x1xf32>
    %3 = vector.broadcast %2 : vector<9x1xf32> to vector<9x512xf32>
    %4 = arith.mulf %1, %3 : vector<9x512xf32>
    %cst = arith.constant dense<0.000000e+00> : vector<512xf32>
    %5 = vector.multi_reduction <add>, %4, %cst [0] : vector<9x512xf32> to vector<512xf32>
    %6 = vector.shape_cast %5 : vector<512xf32> to vector<1x512xf32>
    %c0_3 = arith.constant 0 : index
    %c0_4 = arith.constant 0 : index
    %7 = vector.load %arg3[%c0_3, %c0_4] : memref<1x1xf32, #tpu.memory_space<vmem>>, vector<1x1xf32>
    %8 = vector.broadcast %7 : vector<1x1xf32> to vector<1x512xf32>
    %9 = arith.addf %6, %8 : vector<1x512xf32>
    %c0_5 = arith.constant 0 : index
    %c0_6 = arith.constant 0 : index
    %10 = vector.load %arg4[%c0_5, %c0_6] : memref<1x512xf32, #tpu.memory_space<vmem>>, vector<1x512xf32>
    tpu.vector_store %arg4[%c0_5, %c0_6], %9 {strides = array<i32>} : memref<1x512xf32, #tpu.memory_space<vmem>>, vector<1x512xf32>,
    return
  }
  func.func @transform_0(%arg0: i32) -> (i32, i32) {
    %c0_i32 = arith.constant 0 : i32
    %c0_i32_0 = arith.constant 0 : i32
    return %c0_i32, %arg0 : i32, i32
  }
  func.func @transform_1(%arg0: i32) -> (i32, i32) {
    %c0_i32 = arith.constant 0 : i32
    %c0_i32_0 = arith.constant 0 : i32
    %c0_i32_1 = arith.constant 0 : i32
    return %c0_i32, %c0_i32_0 : i32, i32
  }
  func.func @transform_2(%arg0: i32) -> (i32, i32) {
    %c0_i32 = arith.constant 0 : i32
    %c0_i32_0 = arith.constant 0 : i32
    %c0_i32_1 = arith.constant 0 : i32
    return %c0_i32, %c0_i32_0 : i32, i32
  }
  func.func @transform_3(%arg0: i32) -> (i32, i32) {
    %c0_i32 = arith.constant 0 : i32
    %c0_i32_0 = arith.constant 0 : i32
    return %c0_i32, %arg0 : i32, i32
  }
}

module attributes {stable_mosaic.version = 11 : i64} {
  func.func @_scn_core_kernel(%arg0: i32, %arg1: memref<9x512xbf16, #tpu.memory_space<vmem>>, %arg2: memref<32x9xbf16, #tpu.memory_space<vmem>>, %arg3: memref<32x1xf32, #tpu.memory_space<vmem>>, %arg4: memref<32x32xbf16, #tpu.memory_space<vmem>>, %arg5: memref<9x32xbf16, #tpu.memory_space<vmem>>, %arg6: memref<9x512xf32, #tpu.memory_space<vmem>>) attributes {dimension_semantics = [#tpu.dimension_semantics<parallel>], iteration_bounds = array<i64: 1>, scalar_prefetch = 0 : i64, scratch_operands = 0 : i64, tpu.core_type = #tpu.core_type<tc>, window_params = [{transform_indices = @transform_0, window_bounds = array<i64: 9, 512>}, {pipeline_mode = #tpu.pipeline_mode<synchronous>, transform_indices = @transform_1, window_bounds = array<i64: 32, 9>}, {pipeline_mode = #tpu.pipeline_mode<synchronous>, transform_indices = @transform_2, window_bounds = array<i64: 32, 1>}, {pipeline_mode = #tpu.pipeline_mode<synchronous>, transform_indices = @transform_3, window_bounds = array<i64: 32, 32>}, {pipeline_mode = #tpu.pipeline_mode<synchronous>, transform_indices = @transform_4, window_bounds = array<i64: 9, 32>}, {transform_indices = @transform_5, window_bounds = array<i64: 9, 512>}]} {
    %c0 = arith.constant 0 : index
    %c0_0 = arith.constant 0 : index
    %0 = vector.load %arg2[%c0, %c0_0] : memref<32x9xbf16, #tpu.memory_space<vmem>>, vector<32x9xbf16>
    %c0_1 = arith.constant 0 : index
    %c0_2 = arith.constant 0 : index
    %1 = vector.load %arg1[%c0_1, %c0_2] : memref<9x512xbf16, #tpu.memory_space<vmem>>, vector<9x512xbf16>
    %cst = arith.constant dense<0.000000e+00> : vector<32x512xf32>
    %2 = tpu.matmul %0, %1, %cst {dimension_numbers = #tpu.dot_dimension_numbers<[1], [0], [0], [1], [0, 0, 1, 1], [], []>} : vector<32x9xbf16>, vector<9x512xbf16>, vector<32x512xf32> -> vector<32x512xf32>
    %c0_3 = arith.constant 0 : index
    %c0_4 = arith.constant 0 : index
    %3 = vector.load %arg3[%c0_3, %c0_4] : memref<32x1xf32, #tpu.memory_space<vmem>>, vector<32x1xf32>
    %4 = vector.broadcast %3 : vector<32x1xf32> to vector<32x512xf32>
    %5 = arith.addf %2, %4 : vector<32x512xf32>
    %c0_5 = arith.constant 0 : index
    %c0_6 = arith.constant 0 : index
    %6 = vector.load %arg4[%c0_5, %c0_6] : memref<32x32xbf16, #tpu.memory_space<vmem>>, vector<32x32xbf16>
    %cst_7 = arith.constant 1.000000e+00 : f32
    %7 = vector.broadcast %cst_7 : f32 to vector<32x512xf32>
    %8 = arith.cmpf ogt, %5, %7 : vector<32x512xf32>
    %cst_8 = arith.constant 1.000000e+00 : f32
    %9 = vector.broadcast %cst_8 : f32 to vector<32x512xf32>
    %10 = arith.subf %5, %9 : vector<32x512xf32>
    %cst_9 = arith.constant -1.000000e+00 : f32
    %11 = vector.broadcast %cst_9 : f32 to vector<32x512xf32>
    %12 = arith.cmpf olt, %5, %11 : vector<32x512xf32>
    %cst_10 = arith.constant 1.000000e+00 : f32
    %13 = vector.broadcast %cst_10 : f32 to vector<32x512xf32>
    %14 = arith.addf %5, %13 : vector<32x512xf32>
    %cst_11 = arith.constant 0.000000e+00 : f32
    %15 = vector.broadcast %cst_11 : f32 to vector<32x512xf32>
    %16 = arith.select %12, %14, %15 : vector<32x512xi1>, vector<32x512xf32>
    %17 = arith.select %8, %10, %16 : vector<32x512xi1>, vector<32x512xf32>
    %18 = arith.truncf %17 : vector<32x512xf32> to vector<32x512xbf16>
    %cst_12 = arith.constant dense<0.000000e+00> : vector<32x512xf32>
    %19 = tpu.matmul %6, %18, %cst_12 {dimension_numbers = #tpu.dot_dimension_numbers<[1], [0], [0], [1], [0, 0, 1, 1], [], []>} : vector<32x32xbf16>, vector<32x512xbf16>, vector<32x512xf32> -> vector<32x512xf32>
    %20 = arith.addf %19, %5 : vector<32x512xf32>
    %c0_13 = arith.constant 0 : index
    %c0_14 = arith.constant 0 : index
    %21 = vector.load %arg4[%c0_13, %c0_14] : memref<32x32xbf16, #tpu.memory_space<vmem>>, vector<32x32xbf16>
    %cst_15 = arith.constant 1.000000e+00 : f32
    %22 = vector.broadcast %cst_15 : f32 to vector<32x512xf32>
    %23 = arith.cmpf ogt, %20, %22 : vector<32x512xf32>
    %cst_16 = arith.constant 1.000000e+00 : f32
    %24 = vector.broadcast %cst_16 : f32 to vector<32x512xf32>
    %25 = arith.subf %20, %24 : vector<32x512xf32>
    %cst_17 = arith.constant -1.000000e+00 : f32
    %26 = vector.broadcast %cst_17 : f32 to vector<32x512xf32>
    %27 = arith.cmpf olt, %20, %26 : vector<32x512xf32>
    %cst_18 = arith.constant 1.000000e+00 : f32
    %28 = vector.broadcast %cst_18 : f32 to vector<32x512xf32>
    %29 = arith.addf %20, %28 : vector<32x512xf32>
    %cst_19 = arith.constant 0.000000e+00 : f32
    %30 = vector.broadcast %cst_19 : f32 to vector<32x512xf32>
    %31 = arith.select %27, %29, %30 : vector<32x512xi1>, vector<32x512xf32>
    %32 = arith.select %23, %25, %31 : vector<32x512xi1>, vector<32x512xf32>
    %33 = arith.truncf %32 : vector<32x512xf32> to vector<32x512xbf16>
    %cst_20 = arith.constant dense<0.000000e+00> : vector<32x512xf32>
    %34 = tpu.matmul %21, %33, %cst_20 {dimension_numbers = #tpu.dot_dimension_numbers<[1], [0], [0], [1], [0, 0, 1, 1], [], []>} : vector<32x32xbf16>, vector<32x512xbf16>, vector<32x512xf32> -> vector<32x512xf32>
    %35 = arith.addf %34, %5 : vector<32x512xf32>
    %c0_21 = arith.constant 0 : index
    %c0_22 = arith.constant 0 : index
    %36 = vector.load %arg4[%c0_21, %c0_22] : memref<32x32xbf16, #tpu.memory_space<vmem>>, vector<32x32xbf16>
    %cst_23 = arith.constant 1.000000e+00 : f32
    %37 = vector.broadcast %cst_23 : f32 to vector<32x512xf32>
    %38 = arith.cmpf ogt, %35, %37 : vector<32x512xf32>
    %cst_24 = arith.constant 1.000000e+00 : f32
    %39 = vector.broadcast %cst_24 : f32 to vector<32x512xf32>
    %40 = arith.subf %35, %39 : vector<32x512xf32>
    %cst_25 = arith.constant -1.000000e+00 : f32
    %41 = vector.broadcast %cst_25 : f32 to vector<32x512xf32>
    %42 = arith.cmpf olt, %35, %41 : vector<32x512xf32>
    %cst_26 = arith.constant 1.000000e+00 : f32
    %43 = vector.broadcast %cst_26 : f32 to vector<32x512xf32>
    %44 = arith.addf %35, %43 : vector<32x512xf32>
    %cst_27 = arith.constant 0.000000e+00 : f32
    %45 = vector.broadcast %cst_27 : f32 to vector<32x512xf32>
    %46 = arith.select %42, %44, %45 : vector<32x512xi1>, vector<32x512xf32>
    %47 = arith.select %38, %40, %46 : vector<32x512xi1>, vector<32x512xf32>
    %48 = arith.truncf %47 : vector<32x512xf32> to vector<32x512xbf16>
    %cst_28 = arith.constant dense<0.000000e+00> : vector<32x512xf32>
    %49 = tpu.matmul %36, %48, %cst_28 {dimension_numbers = #tpu.dot_dimension_numbers<[1], [0], [0], [1], [0, 0, 1, 1], [], []>} : vector<32x32xbf16>, vector<32x512xbf16>, vector<32x512xf32> -> vector<32x512xf32>
    %50 = arith.addf %49, %5 : vector<32x512xf32>
    %c0_29 = arith.constant 0 : index
    %c0_30 = arith.constant 0 : index
    %51 = vector.load %arg5[%c0_29, %c0_30] : memref<9x32xbf16, #tpu.memory_space<vmem>>, vector<9x32xbf16>
    %cst_31 = arith.constant 1.000000e+00 : f32
    %52 = vector.broadcast %cst_31 : f32 to vector<32x512xf32>
    %53 = arith.cmpf ogt, %50, %52 : vector<32x512xf32>
    %cst_32 = arith.constant 1.000000e+00 : f32
    %54 = vector.broadcast %cst_32 : f32 to vector<32x512xf32>
    %55 = arith.subf %50, %54 : vector<32x512xf32>
    %cst_33 = arith.constant -1.000000e+00 : f32
    %56 = vector.broadcast %cst_33 : f32 to vector<32x512xf32>
    %57 = arith.cmpf olt, %50, %56 : vector<32x512xf32>
    %cst_34 = arith.constant 1.000000e+00 : f32
    %58 = vector.broadcast %cst_34 : f32 to vector<32x512xf32>
    %59 = arith.addf %50, %58 : vector<32x512xf32>
    %cst_35 = arith.constant 0.000000e+00 : f32
    %60 = vector.broadcast %cst_35 : f32 to vector<32x512xf32>
    %61 = arith.select %57, %59, %60 : vector<32x512xi1>, vector<32x512xf32>
    %62 = arith.select %53, %55, %61 : vector<32x512xi1>, vector<32x512xf32>
    %63 = arith.truncf %62 : vector<32x512xf32> to vector<32x512xbf16>
    %cst_36 = arith.constant dense<0.000000e+00> : vector<9x512xf32>
    %64 = tpu.matmul %51, %63, %cst_36 {dimension_numbers = #tpu.dot_dimension_numbers<[1], [0], [0], [1], [0, 0, 1, 1], [], []>} : vector<9x32xbf16>, vector<32x512xbf16>, vector<9x512xf32> -> vector<9x512xf32>
    %c0_37 = arith.constant 0 : index
    %c0_38 = arith.constant 0 : index
    %65 = vector.load %arg6[%c0_37, %c0_38] : memref<9x512xf32, #tpu.memory_space<vmem>>, vector<9x512xf32>
    tpu.vector_store %arg6[%c0_37, %c0_38], %64 {strides = array<i32>} : memref<9x512xf32, #tpu.memory_space<vmem>>, vector<9x512xf32>,
    return
  }
  func.func @transform_0(%arg0: i32) -> (i32, i32) {
    %c0_i32 = arith.constant 0 : i32
    %c0_i32_0 = arith.constant 0 : i32
    return %c0_i32, %arg0 : i32, i32
  }
  func.func @transform_1(%arg0: i32) -> (i32, i32) {
    %c0_i32 = arith.constant 0 : i32
    %c0_i32_0 = arith.constant 0 : i32
    %c0_i32_1 = arith.constant 0 : i32
    return %c0_i32, %c0_i32_0 : i32, i32
  }
  func.func @transform_2(%arg0: i32) -> (i32, i32) {
    %c0_i32 = arith.constant 0 : i32
    %c0_i32_0 = arith.constant 0 : i32
    %c0_i32_1 = arith.constant 0 : i32
    return %c0_i32, %c0_i32_0 : i32, i32
  }
  func.func @transform_3(%arg0: i32) -> (i32, i32) {
    %c0_i32 = arith.constant 0 : i32
    %c0_i32_0 = arith.constant 0 : i32
    %c0_i32_1 = arith.constant 0 : i32
    return %c0_i32, %c0_i32_0 : i32, i32
  }
  func.func @transform_4(%arg0: i32) -> (i32, i32) {
    %c0_i32 = arith.constant 0 : i32
    %c0_i32_0 = arith.constant 0 : i32
    %c0_i32_1 = arith.constant 0 : i32
    return %c0_i32, %c0_i32_0 : i32, i32
  }
  func.func @transform_5(%arg0: i32) -> (i32, i32) {
    %c0_i32 = arith.constant 0 : i32
    %c0_i32_0 = arith.constant 0 : i32
    return %c0_i32, %arg0 : i32, i32
  }
}

</mosaic_0001>

<llo_original>
// kernel: scn_dy_forward.2
$region0: #{scn_dy_forward.2}
  #allocation0 [shape = 'u32[]', space=smem, size = 0x4, offset = 0x4, fixed_abs, tag = 'smem constant byte address 0x4 - core index']
  #allocation1 [shape = 'u32[144,128]{1,0:T(1,128)}', space=vmem, size = 0x12000, scoped, tag = 'internal scratch']
  #allocation2 [shape = 'f32[1,1]{1,0:T(1,128)S(1)}', space=vmem, size = 0x200, scoped, tag = 'scoped memory for scn_dy_forward.2']
  %s0 = inlined_call_operand.vmem [shape: bf16[9,512], index: 0, kind: input, shape index: {}]
  %s1 = inlined_call_operand.vmem [shape: f32[9,1], index: 1, kind: input, shape index: {}]
  %s2 = inlined_call_operand.<no memory space> [shape: f32[1,1], index: 2, kind: input, shape index: {}]
  %s3 = inlined_call_operand.vmem [shape: f32[1,512], index: 3, kind: output, shape index: {}]
  %s4 = sld [smem:[#allocation0]]
  $region22: #{scn_dy_forward.2} parent=0
    _
  %s6 = ssub.s32 1, %s4
  %s7 = scalar_select 0, %s6, %s4
  %v8 = vstv %s2
  %9 = vst [vmem:[#allocation2] sm:$0x1] %v8
  // Predicated region
  $region2: #{scn_dy_forward.2} parent=0 // pred_check
    _
  $region3: #{scn_dy_forward.2} parent=0 // pred_check_branch
    %11 = sbr.rel (0) target = $region5
  $region4: #{scn_dy_forward.2} parent=0 // pred_region
    _
  $region5: #{scn_dy_forward.2} parent=0 // pred_fallthru
    _
  // Predicated region
  $region6: #{scn_dy_forward.2} parent=0 // pred_check
    _
  $region7: #{scn_dy_forward.2} parent=0 // pred_check_branch
    %13 = sbr.rel (0) target = $region9
  $region8: #{scn_dy_forward.2} parent=0 // pred_region
    _
  $region9: #{scn_dy_forward.2} parent=0 // pred_fallthru
    _
  // Predicated region
  $region10: #{scn_dy_forward.2} parent=0 // pred_check
    _
  $region11: #{scn_dy_forward.2} parent=0 // pred_check_branch
    %15 = sbr.rel (0) target = $region13
  $region12: #{scn_dy_forward.2} parent=0 // pred_region
    _
  $region13: #{scn_dy_forward.2} parent=0 // pred_fallthru
    _
  %v16 = vld [vmem:[%s0] sm:$0xff]
  %v17 = vld [vmem:[%s0 + $0x8] sm:$0xff]
  %v18 = vld [vmem:[%s0 + $0x10] sm:$0x11]
  %v19 = vld [vmem:[%s0 + $0x18] sm:$0x11]
  %v20 = vunpack.c.l.bf16 %v16
  %v21 = vunpack.c.h.bf16 %v16
  %v22 = vunpack.c.l.bf16 %v17
  %v23 = vunpack.c.h.bf16 %v17
  %v24 = vunpack.c.l.bf16 %v18
  %v25 = vunpack.c.h.bf16 %v18
  %v26 = vunpack.c.l.bf16 %v19
  %v27 = vunpack.c.h.bf16 %v19
  %v28 = vld [vmem:[%s1] sm:$0xff]
  %v29 = vld [vmem:[%s1 + $0x8] sm:$0x1]
  %31 = vset.pattern.permute.xlu0 0
  %32 = vperm.xlu0 %31, %v28
  %v33 = vpop.permute.xlu0 %32
  %36 = vset.pattern.permute.xlu0 0
  %37 = vperm.xlu0 %36, %v29
  %v38 = vpop.permute.xlu0 %37
  %v40 = vmul.f32 %v20, %v33
  %v41 = vmul.f32 %v21, %v33
  %v42 = vmul.f32 %v22, %v33
  %v43 = vmul.f32 %v23, %v33
  %v44 = vmul.f32 %v24, %v38
  %v45 = vmul.f32 %v25, %v38
  %v46 = vmul.f32 %v26, %v38
  %v47 = vmul.f32 %v27, %v38
  %vm48 = vcmask 1040384
  %v49 = vsel %vm48, %v44, 0.0
  %v50 = vadd.f32 %v40, %v49
  %v51 = vrot.slane %v50, 4
  %v52 = vadd.f32 %v50, %v51
  %v53 = vrot.slane %v52, 2
  %v54 = vadd.f32 %v52, %v53
  %v55 = vrot.slane %v54, 1
  %v56 = vadd.f32 %v54, %v55
  %v57 = vsel %vm48, %v45, 0.0
  %v58 = vadd.f32 %v41, %v57
  %v59 = vrot.slane %v58, 4
  %v60 = vadd.f32 %v58, %v59
  %v61 = vrot.slane %v60, 2
  %v62 = vadd.f32 %v60, %v61
  %v63 = vrot.slane %v62, 1
  %v64 = vadd.f32 %v62, %v63
  %v65 = vsel %vm48, %v46, 0.0
  %v66 = vadd.f32 %v42, %v65
  %v67 = vrot.slane %v66, 4
  %v68 = vadd.f32 %v66, %v67
  %v69 = vrot.slane %v68, 2
  %v70 = vadd.f32 %v68, %v69
  %v71 = vrot.slane %v70, 1
  %v72 = vadd.f32 %v70, %v71
  %v73 = vsel %vm48, %v47, 0.0
  %v74 = vadd.f32 %v43, %v73
  %v75 = vrot.slane %v74, 4
  %v76 = vadd.f32 %v74, %v75
  %v77 = vrot.slane %v76, 2
  %v78 = vadd.f32 %v76, %v77
  %v79 = vrot.slane %v78, 1
  %v80 = vadd.f32 %v78, %v79
  %v81 = vld [vmem:[#allocation2] sm:$0x1]
  %83 = vset.pattern.permute.xlu0 0
  %84 = vperm.xlu0 %83, %v81
  %v85 = vpop.permute.xlu0 %84
  %v87 = vlaneseq
  %v88 = vshrl.u32 %v87, 7
  %v89 = vsub.s32 0, %v88
  %v90 = vrot.slane %v85, %v89
  %v91 = vadd.f32 %v56, %v90
  %v92 = vadd.f32 %v64, %v90
  %v93 = vadd.f32 %v72, %v90
  %v94 = vadd.f32 %v80, %v90
  %v99 = vcombine.low %v91, %v92
  %v100 = vcombine.low %v93, %v94
  %v102 = vunpack.c.l.s4 1966171168
  %v103 = vunpack.c.0.s8 %v102
  %v104 = vlaneseq
  %v105 = vshrl.u32 %v104, 7
  %v106 = vsub.s32 %v103, %v105
  %v107 = vrot.slane %v99, %v106
  %v109 = vunpack.c.l.s4 1966171168
  %v110 = vunpack.c.0.s8 %v109
  %v111 = vlaneseq
  %v112 = vshrl.u32 %v111, 7
  %v113 = vsub.s32 %v110, %v112
  %v114 = vrot.slane %v100, %v113
  %v115 = vcombine.low %v107, %v114
  %v117 = vunpack.c.l.s4 1966171168
  %v118 = vunpack.c.0.s8 %v117
  %v119 = vlaneseq
  %v120 = vshrl.u32 %v119, 7
  %v121 = vsub.s32 %v118, %v120
  %v122 = vrot.slane %v115, %v121
  %v124 = vlaneseq
  %vm125 = vcmp.ge.s32.totalorder %v124, 0
  %vm126 = vcmp.lt.s32.totalorder %v124, 512
  %vm127 = vmand %vm125, %vm126
  %128 = vst.msk [vmem:[%s3] sm:$0xf] %vm127, %v122
  // Predicated region
  $region14: #{scn_dy_forward.2} parent=0 // pred_check
    _
  $region15: #{scn_dy_forward.2} parent=0 // pred_check_branch
    %130 = sbr.rel (0) target = $region17
  $region16: #{scn_dy_forward.2} parent=0 // pred_region
    _
  $region17: #{scn_dy_forward.2} parent=0 // pred_fallthru
    _
  // Predicated region
  $region18: #{scn_dy_forward.2} parent=0 // pred_check
    _
  $region19: #{scn_dy_forward.2} parent=0 // pred_check_branch
    %132 = sbr.rel (0) target = $region21
  $region20: #{scn_dy_forward.2} parent=0 // pred_region
    _
  $region21: #{scn_dy_forward.2} parent=0 // pred_fallthru
    _

// kernel: scn_dy_forward.3
$region0: #{scn_dy_forward.3}
  #allocation0 [shape = 'u32[]', space=smem, size = 0x4, offset = 0x4, fixed_abs, tag = 'smem constant byte address 0x4 - core index']
  #allocation1 [shape = 'u32[144,128]{1,0:T(1,128)}', space=vmem, size = 0x12000, scoped, tag = 'internal scratch']
  %s0 = inlined_call_operand.vmem [shape: bf16[9,512], index: 0, kind: input, shape index: {}]
  %s1 = inlined_call_operand.vmem [shape: bf16[32,9], index: 1, kind: input, shape index: {}]
  %s2 = inlined_call_operand.vmem [shape: f32[32,1], index: 2, kind: input, shape index: {}]
  %s3 = inlined_call_operand.vmem [shape: bf16[32,32], index: 3, kind: input, shape index: {}]
  %s4 = inlined_call_operand.vmem [shape: bf16[9,32], index: 4, kind: input, shape index: {}]
  %s5 = inlined_call_operand.vmem [shape: f32[9,512], index: 5, kind: output, shape index: {}]
  %s6 = sld [smem:[#allocation0]]
  $region30: #{scn_dy_forward.3} parent=0
    _
  %s8 = ssub.s32 1, %s6
  %s9 = scalar_select 0, %s8, %s6
  // Predicated region
  $region2: #{scn_dy_forward.3} parent=0 // pred_check
    _
  $region3: #{scn_dy_forward.3} parent=0 // pred_check_branch
    %11 = sbr.rel (0) target = $region5
  $region4: #{scn_dy_forward.3} parent=0 // pred_region
    _
  $region5: #{scn_dy_forward.3} parent=0 // pred_fallthru
    _
  // Predicated region
  $region6: #{scn_dy_forward.3} parent=0 // pred_check
    _
  $region7: #{scn_dy_forward.3} parent=0 // pred_check_branch
    %13 = sbr.rel (0) target = $region9
  $region8: #{scn_dy_forward.3} parent=0 // pred_region
    _
  $region9: #{scn_dy_forward.3} parent=0 // pred_fallthru
    _
  // Predicated region
  $region10: #{scn_dy_forward.3} parent=0 // pred_check
    _
  $region11: #{scn_dy_forward.3} parent=0 // pred_check_branch
    %15 = sbr.rel (0) target = $region13
  $region12: #{scn_dy_forward.3} parent=0 // pred_region
    _
  $region13: #{scn_dy_forward.3} parent=0 // pred_fallthru
    _
  // Predicated region
  $region14: #{scn_dy_forward.3} parent=0 // pred_check
    _
  $region15: #{scn_dy_forward.3} parent=0 // pred_check_branch
    %17 = sbr.rel (0) target = $region17
  $region16: #{scn_dy_forward.3} parent=0 // pred_region
    _
  $region17: #{scn_dy_forward.3} parent=0 // pred_fallthru
    _
  // Predicated region
  $region18: #{scn_dy_forward.3} parent=0 // pred_check
    _
  $region19: #{scn_dy_forward.3} parent=0 // pred_check_branch
    %19 = sbr.rel (0) target = $region21
  $region20: #{scn_dy_forward.3} parent=0 // pred_region
    _
  $region21: #{scn_dy_forward.3} parent=0 // pred_fallthru
    _
  %v21 = vld [vmem:[%s1] sm:$0xf]
  %v22 = vld [vmem:[%s1 + $0x4] sm:$0xf]
  %v23 = vld [vmem:[%s1 + $0x8] sm:$0xf]
  %v24 = vld [vmem:[%s1 + $0xc] sm:$0xf]
  %v25 = vld [vmem:[%s0] sm:$0xff]
  %v26 = vld [vmem:[%s0 + $0x8] sm:$0xff]
  %v27 = vld [vmem:[%s0 + $0x10] sm:$0x11]
  %v28 = vld [vmem:[%s0 + $0x18] sm:$0x11]
  %v29 = vld [vmem:[%s2] sm:$0xff]
  %v30 = vld [vmem:[%s2 + $0x8] sm:$0xff]
  %v31 = vld [vmem:[%s2 + $0x10] sm:$0xff]
  %v32 = vld [vmem:[%s2 + $0x18] sm:$0xff]
  %34 = vset.pattern.permute.xlu0 0
  %35 = vperm.xlu0 %34, %v29
  %v36 = vpop.permute.xlu0 %35
  %39 = vset.pattern.permute.xlu0 0
  %40 = vperm.xlu0 %39, %v30
  %v41 = vpop.permute.xlu0 %40
  %44 = vset.pattern.permute.xlu0 0
  %45 = vperm.xlu0 %44, %v31
  %v46 = vpop.permute.xlu0 %45
  %49 = vset.pattern.permute.xlu0 0
  %50 = vperm.xlu0 %49, %v32
  %v51 = vpop.permute.xlu0 %50
  %v57 = vunpack.c.l.b16 %v21
  %v58 = vunpack.c.l.b16 %v22
  %v59 = vunpack.c.l.b16 %v23
  %v60 = vunpack.c.l.b16 %v24
  %v61 = vpack.c.b16 %v58, %v57
  %v62 = vpack.c.b16 %v60, %v59
  %v67 = vunpack.c.l.b16 %v25
  %v68 = vunpack.c.h.b16 %v25
  %v69 = vunpack.c.l.b16 %v26
  %v70 = vunpack.c.h.b16 %v26
  %v71 = vunpack.c.l.b16 %v27
  %v72 = vunpack.c.h.b16 %v27
  %v73 = vunpack.c.l.b16 %v28
  %v74 = vunpack.c.h.b16 %v28
  %v75 = vpack.c.b16 %v71, %v67
  %v76 = vpack.c.b16 %v72, %v68
  %v77 = vpack.c.b16 %v73, %v69
  %v78 = vpack.c.b16 %v74, %v70
  %vm79 = vcmask 72704
  %v81 = vsel %vm79, %v61, 0
  %v84 = vsel %vm79, %v62, 0
  %vm86 = vcmask 1043456
  %vm87 = vcmask 1044480
  %v88 = vsel %vm86, 4294967295, 65535
  %v89 = vsel %vm87, %v88, 0
  %v91 = vand.u32 %v75, %v89
  %v94 = vand.u32 %v76, %v89
  %v97 = vand.u32 %v77, %v89
  %v100 = vand.u32 %v78, %v89
  %102 = vmatprep.subr.bf16.mxu0 %v94
  %103 = vmatpush1.bf16.msra.mxu0 %v91
  %104 = vmatprep.subr.bf16.mxu0 0
  %105 = vmatpush1.bf16.msra.mxu0 0
  %106 = vmatprep.subr.bf16.mxu0 0
  %107 = vmatpush1.bf16.msra.mxu0 0
  %108 = vmatprep.subr.bf16.mxu0 0
  %109 = vmatpush1.bf16.msra.mxu0 0
  %110 = vmatprep.subr.bf16.mxu0 0
  %111 = vmatpush1.bf16.msra.mxu0 0
  %112 = vmatprep.subr.bf16.mxu0 0
  %113 = vmatpush1.bf16.msra.mxu0 0
  %114 = vmatprep.subr.bf16.mxu0 0
  %115 = vmatpush1.bf16.msra.mxu0 0
  %116 = vmatprep.subr.bf16.mxu0 0
  %117 = vmatpush1.bf16.msra.mxu0 0
  %118 = vmatprep.subr.bf16.mxu0 0
  %119 = vmatpush1.bf16.msra.mxu0 0
  %120 = vmatprep.subr.bf16.mxu0 0
  %121 = vmatpush1.bf16.msra.mxu0 0
  %122 = vmatprep.subr.bf16.mxu0 0
  %123 = vmatpush1.bf16.msra.mxu0 0
  %124 = vmatprep.subr.bf16.mxu0 0
  %125 = vmatpush1.bf16.msra.mxu0 0
  %126 = vmatprep.subr.bf16.mxu0 0
  %127 = vmatpush1.bf16.msra.mxu0 0
  %128 = vmatprep.subr.bf16.mxu0 0
  %129 = vmatpush1.bf16.msra.mxu0 0
  %130 = vmatprep.subr.bf16.mxu0 0
  %131 = vmatpush1.bf16.msra.mxu0 0
  %132 = vmatprep.subr.bf16.mxu0 0
  %133 = vmatpush1.bf16.msra.mxu0 0
  %134 = vmatprep.mubr.bf16.mxu0 0
  %135 = vmatmul.mubr.bf16.gmra.mrb[0].mxu0 %v81
  %v136 = vpop.f32.mrb[0].mxu0
  %v137 = vadd.f32 %v36, %v136
  %v138 = vpop.f32.mrb[0].mxu0
  %v139 = vadd.f32 %v36, %v138
  %v140 = vpop.f32.mrb[0].mxu0
  %v141 = vadd.f32 %v41, %v140
  %v142 = vpop.f32.mrb[0].mxu0
  %v143 = vadd.f32 %v41, %v142
  %144 = vmatprep.mubr.bf16.mxu0 0
  %145 = vmatmul.mubr.bf16.gmra.mrb[0].mxu0 %v84
  %v146 = vpop.f32.mrb[0].mxu0
  %v147 = vadd.f32 %v46, %v146
  %v148 = vpop.f32.mrb[0].mxu0
  %v149 = vadd.f32 %v46, %v148
  %v150 = vpop.f32.mrb[0].mxu0
  %v151 = vadd.f32 %v51, %v150
  %v152 = vpop.f32.mrb[0].mxu0
  %v153 = vadd.f32 %v51, %v152
  %154 = vdwg.mxu0
  %155 = vmatprep.subr.bf16.mxu0 %v100
  %156 = vmatpush1.bf16.msra.mxu0 %v97
  %157 = vmatprep.subr.bf16.mxu0 0
  %158 = vmatpush1.bf16.msra.mxu0 0
  %159 = vmatprep.subr.bf16.mxu0 0
  %160 = vmatpush1.bf16.msra.mxu0 0
  %161 = vmatprep.subr.bf16.mxu0 0
  %162 = vmatpush1.bf16.msra.mxu0 0
  %163 = vmatprep.subr.bf16.mxu0 0
  %164 = vmatpush1.bf16.msra.mxu0 0
  %165 = vmatprep.subr.bf16.mxu0 0
  %166 = vmatpush1.bf16.msra.mxu0 0
  %167 = vmatprep.subr.bf16.mxu0 0
  %168 = vmatpush1.bf16.msra.mxu0 0
  %169 = vmatprep.subr.bf16.mxu0 0
  %170 = vmatpush1.bf16.msra.mxu0 0
  %171 = vmatprep.subr.bf16.mxu0 0
  %172 = vmatpush1.bf16.msra.mxu0 0
  %173 = vmatprep.subr.bf16.mxu0 0
  %174 = vmatpush1.bf16.msra.mxu0 0
  %175 = vmatprep.subr.bf16.mxu0 0
  %176 = vmatpush1.bf16.msra.mxu0 0
  %177 = vmatprep.subr.bf16.mxu0 0
  %178 = vmatpush1.bf16.msra.mxu0 0
  %179 = vmatprep.subr.bf16.mxu0 0
  %180 = vmatpush1.bf16.msra.mxu0 0
  %181 = vmatprep.subr.bf16.mxu0 0
  %182 = vmatpush1.bf16.msra.mxu0 0
  %183 = vmatprep.subr.bf16.mxu0 0
  %184 = vmatpush1.bf16.msra.mxu0 0
  %185 = vmatprep.subr.bf16.mxu0 0
  %186 = vmatpush1.bf16.msra.mxu0 0
  %187 = vmatprep.mubr.bf16.mxu0 0
  %188 = vmatmul.mubr.bf16.gmra.mrb[0].mxu0 %v81
  %v189 = vpop.f32.mrb[0].mxu0
  %v190 = vadd.f32 %v36, %v189
  %v191 = vpop.f32.mrb[0].mxu0
  %v192 = vadd.f32 %v36, %v191
  %v193 = vpop.f32.mrb[0].mxu0
  %v194 = vadd.f32 %v41, %v193
  %v195 = vpop.f32.mrb[0].mxu0
  %v196 = vadd.f32 %v41, %v195
  %197 = vmatprep.mubr.bf16.mxu0 0
  %198 = vmatmul.mubr.bf16.gmra.mrb[0].mxu0 %v84
  %v199 = vpop.f32.mrb[0].mxu0
  %v200 = vadd.f32 %v46, %v199
  %v201 = vpop.f32.mrb[0].mxu0
  %v202 = vadd.f32 %v46, %v201
  %v203 = vpop.f32.mrb[0].mxu0
  %v204 = vadd.f32 %v51, %v203
  %v205 = vpop.f32.mrb[0].mxu0
  %v206 = vadd.f32 %v51, %v205
  %207 = vdwg.mxu0
  %v208 = vld [vmem:[%s3] sm:$0xf]
  %v209 = vld [vmem:[%s3 + $0x4] sm:$0xf]
  %v210 = vld [vmem:[%s3 + $0x8] sm:$0xf]
  %v211 = vld [vmem:[%s3 + $0xc] sm:$0xf]
  %vm212 = vcmp.gt.f32.partialorder %v137, 1.0
  %vm213 = vcmp.gt.f32.partialorder %v139, 1.0
  %vm214 = vcmp.gt.f32.partialorder %v190, 1.0
  %vm215 = vcmp.gt.f32.partialorder %v192, 1.0
  %vm216 = vcmp.gt.f32.partialorder %v141, 1.0
  %vm217 = vcmp.gt.f32.partialorder %v143, 1.0
  %vm218 = vcmp.gt.f32.partialorder %v194, 1.0
  %vm219 = vcmp.gt.f32.partialorder %v196, 1.0
  %vm220 = vcmp.gt.f32.partialorder %v147, 1.0
  %vm221 = vcmp.gt.f32.partialorder %v149, 1.0
  %vm222 = vcmp.gt.f32.partialorder %v200, 1.0
  %vm223 = vcmp.gt.f32.partialorder %v202, 1.0
  %vm224 = vcmp.gt.f32.partialorder %v151, 1.0
  %vm225 = vcmp.gt.f32.partialorder %v153, 1.0
  %vm226 = vcmp.gt.f32.partialorder %v204, 1.0
  %vm227 = vcmp.gt.f32.partialorder %v206, 1.0
  %v228 = vsub.f32 %v137, 1.0
  %v229 = vsub.f32 %v139, 1.0
  %v230 = vsub.f32 %v190, 1.0
  %v231 = vsub.f32 %v192, 1.0
  %v232 = vsub.f32 %v141, 1.0
  %v233 = vsub.f32 %v143, 1.0
  %v234 = vsub.f32 %v194, 1.0
  %v235 = vsub.f32 %v196, 1.0
  %v236 = vsub.f32 %v147, 1.0
  %v237 = vsub.f32 %v149, 1.0
  %v238 = vsub.f32 %v200, 1.0
  %v239 = vsub.f32 %v202, 1.0
  %v240 = vsub.f32 %v151, 1.0
  %v241 = vsub.f32 %v153, 1.0
  %v242 = vsub.f32 %v204, 1.0
  %v243 = vsub.f32 %v206, 1.0
  %vm244 = vcmp.lt.f32.partialorder %v137, -1.0
  %vm245 = vcmp.lt.f32.partialorder %v139, -1.0
  %vm246 = vcmp.lt.f32.partialorder %v190, -1.0
  %vm247 = vcmp.lt.f32.partialorder %v192, -1.0
  %vm248 = vcmp.lt.f32.partialorder %v141, -1.0
  %vm249 = vcmp.lt.f32.partialorder %v143, -1.0
  %vm250 = vcmp.lt.f32.partialorder %v194, -1.0
  %vm251 = vcmp.lt.f32.partialorder %v196, -1.0
  %vm252 = vcmp.lt.f32.partialorder %v147, -1.0
  %vm253 = vcmp.lt.f32.partialorder %v149, -1.0
  %vm254 = vcmp.lt.f32.partialorder %v200, -1.0
  %vm255 = vcmp.lt.f32.partialorder %v202, -1.0
  %vm256 = vcmp.lt.f32.partialorder %v151, -1.0
  %vm257 = vcmp.lt.f32.partialorder %v153, -1.0
  %vm258 = vcmp.lt.f32.partialorder %v204, -1.0
  %vm259 = vcmp.lt.f32.partialorder %v206, -1.0
  %v260 = vadd.f32 %v137, 1.0
  %v261 = vadd.f32 %v139, 1.0
  %v262 = vadd.f32 %v190, 1.0
  %v263 = vadd.f32 %v192, 1.0
  %v264 = vadd.f32 %v141, 1.0
  %v265 = vadd.f32 %v143, 1.0
  %v266 = vadd.f32 %v194, 1.0
  %v267 = vadd.f32 %v196, 1.0
  %v268 = vadd.f32 %v147, 1.0
  %v269 = vadd.f32 %v149, 1.0
  %v270 = vadd.f32 %v200, 1.0
  %v271 = vadd.f32 %v202, 1.0
  %v272 = vadd.f32 %v151, 1.0
  %v273 = vadd.f32 %v153, 1.0
  %v274 = vadd.f32 %v204, 1.0
  %v275 = vadd.f32 %v206, 1.0
  %v276 = vsel %vm244, %v260, 0.0
  %v277 = vsel %vm245, %v261, 0.0
  %v278 = vsel %vm246, %v262, 0.0
  %v279 = vsel %vm247, %v263, 0.0
  %v280 = vsel %vm248, %v264, 0.0
  %v281 = vsel %vm249, %v265, 0.0
  %v282 = vsel %vm250, %v266, 0.0
  %v283 = vsel %vm251, %v267, 0.0
  %v284 = vsel %vm252, %v268, 0.0
  %v285 = vsel %vm253, %v269, 0.0
  %v286 = vsel %vm254, %v270, 0.0
  %v287 = vsel %vm255, %v271, 0.0
  %v288 = vsel %vm256, %v272, 0.0
  %v289 = vsel %vm257, %v273, 0.0
  %v290 = vsel %vm258, %v274, 0.0
  %v291 = vsel %vm259, %v275, 0.0
  %v292 = vsel %vm212, %v228, %v276
  %v293 = vsel %vm213, %v229, %v277
  %v294 = vsel %vm214, %v230, %v278
  %v295 = vsel %vm215, %v231, %v279
  %v296 = vsel %vm216, %v232, %v280
  %v297 = vsel %vm217, %v233, %v281
  %v298 = vsel %vm218, %v234, %v282
  %v299 = vsel %vm219, %v235, %v283
  %v300 = vsel %vm220, %v236, %v284
  %v301 = vsel %vm221, %v237, %v285
  %v302 = vsel %vm222, %v238, %v286
  %v303 = vsel %vm223, %v239, %v287
  %v304 = vsel %vm224, %v240, %v288
  %v305 = vsel %vm225, %v241, %v289
  %v306 = vsel %vm226, %v242, %v290
  %v307 = vsel %vm227, %v243, %v291
  %v308 = vpack.c.bf16 %v296, %v292
  %v309 = vpack.c.bf16 %v297, %v293
  %v310 = vpack.c.bf16 %v298, %v294
  %v311 = vpack.c.bf16 %v299, %v295
  %v312 = vpack.c.bf16 %v304, %v300
  %v313 = vpack.c.bf16 %v305, %v301
  %v314 = vpack.c.bf16 %v306, %v302
  %v315 = vpack.c.bf16 %v307, %v303
  %v320 = vunpack.c.l.b16 %v208
  %v321 = vunpack.c.l.b16 %v209
  %v322 = vunpack.c.l.b16 %v210
  %v323 = vunpack.c.l.b16 %v211
  %v324 = vpack.c.b16 %v321, %v320
  %v325 = vpack.c.b16 %v323, %v322
  %vm326 = vcmask 261120
  %v328 = vsel %vm326, %v324, 0
  %v331 = vsel %vm326, %v325, 0
  %333 = vmatprep.subr.bf16.mxu0 %v309
  %334 = vmatpush1.bf16.msra.mxu0 %v308
  %335 = vmatprep.subr.bf16.mxu0 %v313
  %336 = vmatpush1.bf16.msra.mxu0 %v312
  %337 = vmatprep.subr.bf16.mxu0 0
  %338 = vmatpush1.bf16.msra.mxu0 0
  %339 = vmatprep.subr.bf16.mxu0 0
  %340 = vmatpush1.bf16.msra.mxu0 0
  %341 = vmatprep.subr.bf16.mxu0 0
  %342 = vmatpush1.bf16.msra.mxu0 0
  %343 = vmatprep.subr.bf16.mxu0 0
  %344 = vmatpush1.bf16.msra.mxu0 0
  %345 = vmatprep.subr.bf16.mxu0 0
  %346 = vmatpush1.bf16.msra.mxu0 0
  %347 = vmatprep.subr.bf16.mxu0 0
  %348 = vmatpush1.bf16.msra.mxu0 0
  %349 = vmatprep.subr.bf16.mxu0 0
  %350 = vmatpush1.bf16.msra.mxu0 0
  %351 = vmatprep.subr.bf16.mxu0 0
  %352 = vmatpush1.bf16.msra.mxu0 0
  %353 = vmatprep.subr.bf16.mxu0 0
  %354 = vmatpush1.bf16.msra.mxu0 0
  %355 = vmatprep.subr.bf16.mxu0 0
  %356 = vmatpush1.bf16.msra.mxu0 0
  %357 = vmatprep.subr.bf16.mxu0 0
  %358 = vmatpush1.bf16.msra.mxu0 0
  %359 = vmatprep.subr.bf16.mxu0 0
  %360 = vmatpush1.bf16.msra.mxu0 0
  %361 = vmatprep.subr.bf16.mxu0 0
  %362 = vmatpush1.bf16.msra.mxu0 0
  %363 = vmatprep.subr.bf16.mxu0 0
  %364 = vmatpush1.bf16.msra.mxu0 0
  %365 = vmatprep.mubr.bf16.mxu0 0
  %366 = vmatmul.mubr.bf16.gmra.mrb[0].mxu0 %v328
  %v367 = vpop.f32.mrb[0].mxu0
  %v368 = vadd.f32 %v137, %v367
  %v369 = vpop.f32.mrb[0].mxu0
  %v370 = vadd.f32 %v139, %v369
  %v371 = vpop.f32.mrb[0].mxu0
  %v372 = vadd.f32 %v141, %v371
  %v373 = vpop.f32.mrb[0].mxu0
  %v374 = vadd.f32 %v143, %v373
  %375 = vmatprep.mubr.bf16.mxu0 0
  %376 = vmatmul.mubr.bf16.gmra.mrb[0].mxu0 %v331
  %v377 = vpop.f32.mrb[0].mxu0
  %v378 = vadd.f32 %v147, %v377
  %v379 = vpop.f32.mrb[0].mxu0
  %v380 = vadd.f32 %v149, %v379
  %v381 = vpop.f32.mrb[0].mxu0
  %v382 = vadd.f32 %v151, %v381
  %v383 = vpop.f32.mrb[0].mxu0
  %v384 = vadd.f32 %v153, %v383
  %385 = vdwg.mxu0
  %386 = vmatprep.subr.bf16.mxu0 %v311
  %387 = vmatpush1.bf16.msra.mxu0 %v310
  %388 = vmatprep.subr.bf16.mxu0 %v315
  %389 = vmatpush1.bf16.msra.mxu0 %v314
  %390 = vmatprep.subr.bf16.mxu0 0
  %391 = vmatpush1.bf16.msra.mxu0 0
  %392 = vmatprep.subr.bf16.mxu0 0
  %393 = vmatpush1.bf16.msra.mxu0 0
  %394 = vmatprep.subr.bf16.mxu0 0
  %395 = vmatpush1.bf16.msra.mxu0 0
  %396 = vmatprep.subr.bf16.mxu0 0
  %397 = vmatpush1.bf16.msra.mxu0 0
  %398 = vmatprep.subr.bf16.mxu0 0
  %399 = vmatpush1.bf16.msra.mxu0 0
  %400 = vmatprep.subr.bf16.mxu0 0
  %401 = vmatpush1.bf16.msra.mxu0 0
  %402 = vmatprep.subr.bf16.mxu0 0
  %403 = vmatpush1.bf16.msra.mxu0 0
  %404 = vmatprep.subr.bf16.mxu0 0
  %405 = vmatpush1.bf16.msra.mxu0 0
  %406 = vmatprep.subr.bf16.mxu0 0
  %407 = vmatpush1.bf16.msra.mxu0 0
  %408 = vmatprep.subr.bf16.mxu0 0
  %409 = vmatpush1.bf16.msra.mxu0 0
  %410 = vmatprep.subr.bf16.mxu0 0
  %411 = vmatpush1.bf16.msra.mxu0 0
  %412 = vmatprep.subr.bf16.mxu0 0
  %413 = vmatpush1.bf16.msra.mxu0 0
  %414 = vmatprep.subr.bf16.mxu0 0
  %415 = vmatpush1.bf16.msra.mxu0 0
  %416 = vmatprep.subr.bf16.mxu0 0
  %417 = vmatpush1.bf16.msra.mxu0 0
  %418 = vmatprep.mubr.bf16.mxu0 0
  %419 = vmatmul.mubr.bf16.gmra.mrb[0].mxu0 %v328
  %v420 = vpop.f32.mrb[0].mxu0
  %v421 = vadd.f32 %v190, %v420
  %v422 = vpop.f32.mrb[0].mxu0
  %v423 = vadd.f32 %v192, %v422
  %v424 = vpop.f32.mrb[0].mxu0
  %v425 = vadd.f32 %v194, %v424
  %v426 = vpop.f32.mrb[0].mxu0
  %v427 = vadd.f32 %v196, %v426
  %428 = vmatprep.mubr.bf16.mxu0 0
  %429 = vmatmul.mubr.bf16.gmra.mrb[0].mxu0 %v331
  %v430 = vpop.f32.mrb[0].mxu0
  %v431 = vadd.f32 %v200, %v430
  %v432 = vpop.f32.mrb[0].mxu0
  %v433 = vadd.f32 %v202, %v432
  %v434 = vpop.f32.mrb[0].mxu0
  %v435 = vadd.f32 %v204, %v434
  %v436 = vpop.f32.mrb[0].mxu0
  %v437 = vadd.f32 %v206, %v436
  %438 = vdwg.mxu0
  %vm439 = vcmp.gt.f32.partialorder %v368, 1.0
  %vm440 = vcmp.gt.f32.partialorder %v370, 1.0
  %vm441 = vcmp.gt.f32.partialorder %v421, 1.0
  %vm442 = vcmp.gt.f32.partialorder %v423, 1.0
  %vm443 = vcmp.gt.f32.partialorder %v372, 1.0
  %vm444 = vcmp.gt.f32.partialorder %v374, 1.0
  %vm445 = vcmp.gt.f32.partialorder %v425, 1.0
  %vm446 = vcmp.gt.f32.partialorder %v427, 1.0
  %vm447 = vcmp.gt.f32.partialorder %v378, 1.0
  %vm448 = vcmp.gt.f32.partialorder %v380, 1.0
  %vm449 = vcmp.gt.f32.partialorder %v431, 1.0
  %vm450 = vcmp.gt.f32.partialorder %v433, 1.0
  %vm451 = vcmp.gt.f32.partialorder %v382, 1.0
  %vm452 = vcmp.gt.f32.partialorder %v384, 1.0
  %vm453 = vcmp.gt.f32.partialorder %v435, 1.0
  %vm454 = vcmp.gt.f32.partialorder %v437, 1.0
  %v455 = vsub.f32 %v368, 1.0
  %v456 = vsub.f32 %v370, 1.0
  %v457 = vsub.f32 %v421, 1.0
  %v458 = vsub.f32 %v423, 1.0
  %v459 = vsub.f32 %v372, 1.0
  %v460 = vsub.f32 %v374, 1.0
  %v461 = vsub.f32 %v425, 1.0
  %v462 = vsub.f32 %v427, 1.0
  %v463 = vsub.f32 %v378, 1.0
  %v464 = vsub.f32 %v380, 1.0
  %v465 = vsub.f32 %v431, 1.0
  %v466 = vsub.f32 %v433, 1.0
  %v467 = vsub.f32 %v382, 1.0
  %v468 = vsub.f32 %v384, 1.0
  %v469 = vsub.f32 %v435, 1.0
  %v470 = vsub.f32 %v437, 1.0
  %vm471 = vcmp.lt.f32.partialorder %v368, -1.0
  %vm472 = vcmp.lt.f32.partialorder %v370, -1.0
  %vm473 = vcmp.lt.f32.partialorder %v421, -1.0
  %vm474 = vcmp.lt.f32.partialorder %v423, -1.0
  %vm475 = vcmp.lt.f32.partialorder %v372, -1.0
  %vm476 = vcmp.lt.f32.partialorder %v374, -1.0
  %vm477 = vcmp.lt.f32.partialorder %v425, -1.0
  %vm478 = vcmp.lt.f32.partialorder %v427, -1.0
  %vm479 = vcmp.lt.f32.partialorder %v378, -1.0
  %vm480 = vcmp.lt.f32.partialorder %v380, -1.0
  %vm481 = vcmp.lt.f32.partialorder %v431, -1.0
  %vm482 = vcmp.lt.f32.partialorder %v433, -1.0
  %vm483 = vcmp.lt.f32.partialorder %v382, -1.0
  %vm484 = vcmp.lt.f32.partialorder %v384, -1.0
  %vm485 = vcmp.lt.f32.partialorder %v435, -1.0
  %vm486 = vcmp.lt.f32.partialorder %v437, -1.0
  %v487 = vadd.f32 %v368, 1.0
  %v488 = vadd.f32 %v370, 1.0
  %v489 = vadd.f32 %v421, 1.0
  %v490 = vadd.f32 %v423, 1.0
  %v491 = vadd.f32 %v372, 1.0
  %v492 = vadd.f32 %v374, 1.0
  %v493 = vadd.f32 %v425, 1.0
  %v494 = vadd.f32 %v427, 1.0
  %v495 = vadd.f32 %v378, 1.0
  %v496 = vadd.f32 %v380, 1.0
  %v497 = vadd.f32 %v431, 1.0
  %v498 = vadd.f32 %v433, 1.0
  %v499 = vadd.f32 %v382, 1.0
  %v500 = vadd.f32 %v384, 1.0
  %v501 = vadd.f32 %v435, 1.0
  %v502 = vadd.f32 %v437, 1.0
  %v503 = vsel %vm471, %v487, 0.0
  %v504 = vsel %vm472, %v488, 0.0
  %v505 = vsel %vm473, %v489, 0.0
  %v506 = vsel %vm474, %v490, 0.0
  %v507 = vsel %vm475, %v491, 0.0
  %v508 = vsel %vm476, %v492, 0.0
  %v509 = vsel %vm477, %v493, 0.0
  %v510 = vsel %vm478, %v494, 0.0
  %v511 = vsel %vm479, %v495, 0.0
  %v512 = vsel %vm480, %v496, 0.0
  %v513 = vsel %vm481, %v497, 0.0
  %v514 = vsel %vm482, %v498, 0.0
  %v515 = vsel %vm483, %v499, 0.0
  %v516 = vsel %vm484, %v500, 0.0
  %v517 = vsel %vm485, %v501, 0.0
  %v518 = vsel %vm486, %v502, 0.0
  %v519 = vsel %vm439, %v455, %v503
  %v520 = vsel %vm440, %v456, %v504
  %v521 = vsel %vm441, %v457, %v505
  %v522 = vsel %vm442, %v458, %v506
  %v523 = vsel %vm443, %v459, %v507
  %v524 = vsel %vm444, %v460, %v508
  %v525 = vsel %vm445, %v461, %v509
  %v526 = vsel %vm446, %v462, %v510
  %v527 = vsel %vm447, %v463, %v511
  %v528 = vsel %vm448, %v464, %v512
  %v529 = vsel %vm449, %v465, %v513
  %v530 = vsel %vm450, %v466, %v514
  %v531 = vsel %vm451, %v467, %v515
  %v532 = vsel %vm452, %v468, %v516
  %v533 = vsel %vm453, %v469, %v517
  %v534 = vsel %vm454, %v470, %v518
  %v535 = vpack.c.bf16 %v523, %v519
  %v536 = vpack.c.bf16 %v524, %v520
  %v537 = vpack.c.bf16 %v525, %v521
  %v538 = vpack.c.bf16 %v526, %v522
  %v539 = vpack.c.bf16 %v531, %v527
  %v540 = vpack.c.bf16 %v532, %v528
  %v541 = vpack.c.bf16 %v533, %v529
  %v542 = vpack.c.bf16 %v534, %v530
  %543 = vmatprep.subr.bf16.mxu0 %v536
  %544 = vmatpush1.bf16.msra.mxu0 %v535
  %545 = vmatprep.subr.bf16.mxu0 %v540
  %546 = vmatpush1.bf16.msra.mxu0 %v539
  %547 = vmatprep.subr.bf16.mxu0 0
  %548 = vmatpush1.bf16.msra.mxu0 0
  %549 = vmatprep.subr.bf16.mxu0 0
  %550 = vmatpush1.bf16.msra.mxu0 0
  %551 = vmatprep.subr.bf16.mxu0 0
  %552 = vmatpush1.bf16.msra.mxu0 0
  %553 = vmatprep.subr.bf16.mxu0 0
  %554 = vmatpush1.bf16.msra.mxu0 0
  %555 = vmatprep.subr.bf16.mxu0 0
  %556 = vmatpush1.bf16.msra.mxu0 0
  %557 = vmatprep.subr.bf16.mxu0 0
  %558 = vmatpush1.bf16.msra.mxu0 0
  %559 = vmatprep.subr.bf16.mxu0 0
  %560 = vmatpush1.bf16.msra.mxu0 0
  %561 = vmatprep.subr.bf16.mxu0 0
  %562 = vmatpush1.bf16.msra.mxu0 0
  %563 = vmatprep.subr.bf16.mxu0 0
  %564 = vmatpush1.bf16.msra.mxu0 0
  %565 = vmatprep.subr.bf16.mxu0 0
  %566 = vmatpush1.bf16.msra.mxu0 0
  %567 = vmatprep.subr.bf16.mxu0 0
  %568 = vmatpush1.bf16.msra.mxu0 0
  %569 = vmatprep.subr.bf16.mxu0 0
  %570 = vmatpush1.bf16.msra.mxu0 0
  %571 = vmatprep.subr.bf16.mxu0 0
  %572 = vmatpush1.bf16.msra.mxu0 0
  %573 = vmatprep.subr.bf16.mxu0 0
  %574 = vmatpush1.bf16.msra.mxu0 0
  %575 = vmatprep.mubr.bf16.mxu0 0
  %576 = vmatmul.mubr.bf16.gmra.mrb[0].mxu0 %v328
  %v577 = vpop.f32.mrb[0].mxu0
  %v578 = vadd.f32 %v137, %v577
  %v579 = vpop.f32.mrb[0].mxu0
  %v580 = vadd.f32 %v139, %v579
  %v581 = vpop.f32.mrb[0].mxu0
  %v582 = vadd.f32 %v141, %v581
  %v583 = vpop.f32.mrb[0].mxu0
  %v584 = vadd.f32 %v143, %v583
  %585 = vmatprep.mubr.bf16.mxu0 0
  %586 = vmatmul.mubr.bf16.gmra.mrb[0].mxu0 %v331
  %v587 = vpop.f32.mrb[0].mxu0
  %v588 = vadd.f32 %v147, %v587
  %v589 = vpop.f32.mrb[0].mxu0
  %v590 = vadd.f32 %v149, %v589
  %v591 = vpop.f32.mrb[0].mxu0
  %v592 = vadd.f32 %v151, %v591
  %v593 = vpop.f32.mrb[0].mxu0
  %v594 = vadd.f32 %v153, %v593
  %595 = vdwg.mxu0
  %596 = vmatprep.subr.bf16.mxu0 %v538
  %597 = vmatpush1.bf16.msra.mxu0 %v537
  %598 = vmatprep.subr.bf16.mxu0 %v542
  %599 = vmatpush1.bf16.msra.mxu0 %v541
  %600 = vmatprep.subr.bf16.mxu0 0
  %601 = vmatpush1.bf16.msra.mxu0 0
  %602 = vmatprep.subr.bf16.mxu0 0
  %603 = vmatpush1.bf16.msra.mxu0 0
  %604 = vmatprep.subr.bf16.mxu0 0
  %605 = vmatpush1.bf16.msra.mxu0 0
  %606 = vmatprep.subr.bf16.mxu0 0
  %607 = vmatpush1.bf16.msra.mxu0 0
  %608 = vmatprep.subr.bf16.mxu0 0
  %609 = vmatpush1.bf16.msra.mxu0 0
  %610 = vmatprep.subr.bf16.mxu0 0
  %611 = vmatpush1.bf16.msra.mxu0 0
  %612 = vmatprep.subr.bf16.mxu0 0
  %613 = vmatpush1.bf16.msra.mxu0 0
  %614 = vmatprep.subr.bf16.mxu0 0
  %615 = vmatpush1.bf16.msra.mxu0 0
  %616 = vmatprep.subr.bf16.mxu0 0
  %617 = vmatpush1.bf16.msra.mxu0 0
  %618 = vmatprep.subr.bf16.mxu0 0
  %619 = vmatpush1.bf16.msra.mxu0 0
  %620 = vmatprep.subr.bf16.mxu0 0
  %621 = vmatpush1.bf16.msra.mxu0 0
  %622 = vmatprep.subr.bf16.mxu0 0
  %623 = vmatpush1.bf16.msra.mxu0 0
  %624 = vmatprep.subr.bf16.mxu0 0
  %625 = vmatpush1.bf16.msra.mxu0 0
  %626 = vmatprep.subr.bf16.mxu0 0
  %627 = vmatpush1.bf16.msra.mxu0 0
  %628 = vmatprep.mubr.bf16.mxu0 0
  %629 = vmatmul.mubr.bf16.gmra.mrb[0].mxu0 %v328
  %v630 = vpop.f32.mrb[0].mxu0
  %v631 = vadd.f32 %v190, %v630
  %v632 = vpop.f32.mrb[0].mxu0
  %v633 = vadd.f32 %v192, %v632
  %v634 = vpop.f32.mrb[0].mxu0
  %v635 = vadd.f32 %v194, %v634
  %v636 = vpop.f32.mrb[0].mxu0
  %v637 = vadd.f32 %v196, %v636
  %638 = vmatprep.mubr.bf16.mxu0 0
  %639 = vmatmul.mubr.bf16.gmra.mrb[0].mxu0 %v331
  %v640 = vpop.f32.mrb[0].mxu0
  %v641 = vadd.f32 %v200, %v640
  %v642 = vpop.f32.mrb[0].mxu0
  %v643 = vadd.f32 %v202, %v642
  %v644 = vpop.f32.mrb[0].mxu0
  %v645 = vadd.f32 %v204, %v644
  %v646 = vpop.f32.mrb[0].mxu0
  %v647 = vadd.f32 %v206, %v646
  %648 = vdwg.mxu0
  %vm649 = vcmp.gt.f32.partialorder %v578, 1.0
  %vm650 = vcmp.gt.f32.partialorder %v580, 1.0
  %vm651 = vcmp.gt.f32.partialorder %v631, 1.0
  %vm652 = vcmp.gt.f32.partialorder %v633, 1.0
  %vm653 = vcmp.gt.f32.partialorder %v582, 1.0
  %vm654 = vcmp.gt.f32.partialorder %v584, 1.0
  %vm655 = vcmp.gt.f32.partialorder %v635, 1.0
  %vm656 = vcmp.gt.f32.partialorder %v637, 1.0
  %vm657 = vcmp.gt.f32.partialorder %v588, 1.0
  %vm658 = vcmp.gt.f32.partialorder %v590, 1.0
  %vm659 = vcmp.gt.f32.partialorder %v641, 1.0
  %vm660 = vcmp.gt.f32.partialorder %v643, 1.0
  %vm661 = vcmp.gt.f32.partialorder %v592, 1.0
  %vm662 = vcmp.gt.f32.partialorder %v594, 1.0
  %vm663 = vcmp.gt.f32.partialorder %v645, 1.0
  %vm664 = vcmp.gt.f32.partialorder %v647, 1.0
  %v665 = vsub.f32 %v578, 1.0
  %v666 = vsub.f32 %v580, 1.0
  %v667 = vsub.f32 %v631, 1.0
  %v668 = vsub.f32 %v633, 1.0
  %v669 = vsub.f32 %v582, 1.0
  %v670 = vsub.f32 %v584, 1.0
  %v671 = vsub.f32 %v635, 1.0
  %v672 = vsub.f32 %v637, 1.0
  %v673 = vsub.f32 %v588, 1.0
  %v674 = vsub.f32 %v590, 1.0
  %v675 = vsub.f32 %v641, 1.0
  %v676 = vsub.f32 %v643, 1.0
  %v677 = vsub.f32 %v592, 1.0
  %v678 = vsub.f32 %v594, 1.0
  %v679 = vsub.f32 %v645, 1.0
  %v680 = vsub.f32 %v647, 1.0
  %vm681 = vcmp.lt.f32.partialorder %v578, -1.0
  %vm682 = vcmp.lt.f32.partialorder %v580, -1.0
  %vm683 = vcmp.lt.f32.partialorder %v631, -1.0
  %vm684 = vcmp.lt.f32.partialorder %v633, -1.0
  %vm685 = vcmp.lt.f32.partialorder %v582, -1.0
  %vm686 = vcmp.lt.f32.partialorder %v584, -1.0
  %vm687 = vcmp.lt.f32.partialorder %v635, -1.0
  %vm688 = vcmp.lt.f32.partialorder %v637, -1.0
  %vm689 = vcmp.lt.f32.partialorder %v588, -1.0
  %vm690 = vcmp.lt.f32.partialorder %v590, -1.0
  %vm691 = vcmp.lt.f32.partialorder %v641, -1.0
  %vm692 = vcmp.lt.f32.partialorder %v643, -1.0
  %vm693 = vcmp.lt.f32.partialorder %v592, -1.0
  %vm694 = vcmp.lt.f32.partialorder %v594, -1.0
  %vm695 = vcmp.lt.f32.partialorder %v645, -1.0
  %vm696 = vcmp.lt.f32.partialorder %v647, -1.0
  %v697 = vadd.f32 %v578, 1.0
  %v698 = vadd.f32 %v580, 1.0
  %v699 = vadd.f32 %v631, 1.0
  %v700 = vadd.f32 %v633, 1.0
  %v701 = vadd.f32 %v582, 1.0
  %v702 = vadd.f32 %v584, 1.0
  %v703 = vadd.f32 %v635, 1.0
  %v704 = vadd.f32 %v637, 1.0
  %v705 = vadd.f32 %v588, 1.0
  %v706 = vadd.f32 %v590, 1.0
  %v707 = vadd.f32 %v641, 1.0
  %v708 = vadd.f32 %v643, 1.0
  %v709 = vadd.f32 %v592, 1.0
  %v710 = vadd.f32 %v594, 1.0
  %v711 = vadd.f32 %v645, 1.0
  %v712 = vadd.f32 %v647, 1.0
  %v713 = vsel %vm681, %v697, 0.0
  %v714 = vsel %vm682, %v698, 0.0
  %v715 = vsel %vm683, %v699, 0.0
  %v716 = vsel %vm684, %v700, 0.0
  %v717 = vsel %vm685, %v701, 0.0
  %v718 = vsel %vm686, %v702, 0.0
  %v719 = vsel %vm687, %v703, 0.0
  %v720 = vsel %vm688, %v704, 0.0
  %v721 = vsel %vm689, %v705, 0.0
  %v722 = vsel %vm690, %v706, 0.0
  %v723 = vsel %vm691, %v707, 0.0
  %v724 = vsel %vm692, %v708, 0.0
  %v725 = vsel %vm693, %v709, 0.0
  %v726 = vsel %vm694, %v710, 0.0
  %v727 = vsel %vm695, %v711, 0.0
  %v728 = vsel %vm696, %v712, 0.0
  %v729 = vsel %vm649, %v665, %v713
  %v730 = vsel %vm650, %v666, %v714
  %v731 = vsel %vm651, %v667, %v715
  %v732 = vsel %vm652, %v668, %v716
  %v733 = vsel %vm653, %v669, %v717
  %v734 = vsel %vm654, %v670, %v718
  %v735 = vsel %vm655, %v671, %v719
  %v736 = vsel %vm656, %v672, %v720
  %v737 = vsel %vm657, %v673, %v721
  %v738 = vsel %vm658, %v674, %v722
  %v739 = vsel %vm659, %v675, %v723
  %v740 = vsel %vm660, %v676, %v724
  %v741 = vsel %vm661, %v677, %v725
  %v742 = vsel %vm662, %v678, %v726
  %v743 = vsel %vm663, %v679, %v727
  %v744 = vsel %vm664, %v680, %v728
  %v745 = vpack.c.bf16 %v733, %v729
  %v746 = vpack.c.bf16 %v734, %v730
  %v747 = vpack.c.bf16 %v735, %v731
  %v748 = vpack.c.bf16 %v736, %v732
  %v749 = vpack.c.bf16 %v741, %v737
  %v750 = vpack.c.bf16 %v742, %v738
  %v751 = vpack.c.bf16 %v743, %v739
  %v752 = vpack.c.bf16 %v744, %v740
  %753 = vmatprep.subr.bf16.mxu0 %v746
  %754 = vmatpush1.bf16.msra.mxu0 %v745
  %755 = vmatprep.subr.bf16.mxu0 %v750
  %756 = vmatpush1.bf16.msra.mxu0 %v749
  %757 = vmatprep.subr.bf16.mxu0 0
  %758 = vmatpush1.bf16.msra.mxu0 0
  %759 = vmatprep.subr.bf16.mxu0 0
  %760 = vmatpush1.bf16.msra.mxu0 0
  %761 = vmatprep.subr.bf16.mxu0 0
  %762 = vmatpush1.bf16.msra.mxu0 0
  %763 = vmatprep.subr.bf16.mxu0 0
  %764 = vmatpush1.bf16.msra.mxu0 0
  %765 = vmatprep.subr.bf16.mxu0 0
  %766 = vmatpush1.bf16.msra.mxu0 0
  %767 = vmatprep.subr.bf16.mxu0 0
  %768 = vmatpush1.bf16.msra.mxu0 0
  %769 = vmatprep.subr.bf16.mxu0 0
  %770 = vmatpush1.bf16.msra.mxu0 0
  %771 = vmatprep.subr.bf16.mxu0 0
  %772 = vmatpush1.bf16.msra.mxu0 0
  %773 = vmatprep.subr.bf16.mxu0 0
  %774 = vmatpush1.bf16.msra.mxu0 0
  %775 = vmatprep.subr.bf16.mxu0 0
  %776 = vmatpush1.bf16.msra.mxu0 0
  %777 = vmatprep.subr.bf16.mxu0 0
  %778 = vmatpush1.bf16.msra.mxu0 0
  %779 = vmatprep.subr.bf16.mxu0 0
  %780 = vmatpush1.bf16.msra.mxu0 0
  %781 = vmatprep.subr.bf16.mxu0 0
  %782 = vmatpush1.bf16.msra.mxu0 0
  %783 = vmatprep.subr.bf16.mxu0 0
  %784 = vmatpush1.bf16.msra.mxu0 0
  %785 = vmatprep.mubr.bf16.mxu0 0
  %786 = vmatmul.mubr.bf16.gmra.mrb[0].mxu0 %v328
  %v787 = vpop.f32.mrb[0].mxu0
  %v788 = vadd.f32 %v137, %v787
  %v789 = vpop.f32.mrb[0].mxu0
  %v790 = vadd.f32 %v139, %v789
  %v791 = vpop.f32.mrb[0].mxu0
  %v792 = vadd.f32 %v141, %v791
  %v793 = vpop.f32.mrb[0].mxu0
  %v794 = vadd.f32 %v143, %v793
  %795 = vmatprep.mubr.bf16.mxu0 0
  %796 = vmatmul.mubr.bf16.gmra.mrb[0].mxu0 %v331
  %v797 = vpop.f32.mrb[0].mxu0
  %v798 = vadd.f32 %v147, %v797
  %v799 = vpop.f32.mrb[0].mxu0
  %v800 = vadd.f32 %v149, %v799
  %v801 = vpop.f32.mrb[0].mxu0
  %v802 = vadd.f32 %v151, %v801
  %v803 = vpop.f32.mrb[0].mxu0
  %v804 = vadd.f32 %v153, %v803
  %805 = vdwg.mxu0
  %806 = vmatprep.subr.bf16.mxu0 %v748
  %807 = vmatpush1.bf16.msra.mxu0 %v747
  %808 = vmatprep.subr.bf16.mxu0 %v752
  %809 = vmatpush1.bf16.msra.mxu0 %v751
  %810 = vmatprep.subr.bf16.mxu0 0
  %811 = vmatpush1.bf16.msra.mxu0 0
  %812 = vmatprep.subr.bf16.mxu0 0
  %813 = vmatpush1.bf16.msra.mxu0 0
  %814 = vmatprep.subr.bf16.mxu0 0
  %815 = vmatpush1.bf16.msra.mxu0 0
  %816 = vmatprep.subr.bf16.mxu0 0
  %817 = vmatpush1.bf16.msra.mxu0 0
  %818 = vmatprep.subr.bf16.mxu0 0
  %819 = vmatpush1.bf16.msra.mxu0 0
  %820 = vmatprep.subr.bf16.mxu0 0
  %821 = vmatpush1.bf16.msra.mxu0 0
  %822 = vmatprep.subr.bf16.mxu0 0
  %823 = vmatpush1.bf16.msra.mxu0 0
  %824 = vmatprep.subr.bf16.mxu0 0
  %825 = vmatpush1.bf16.msra.mxu0 0
  %826 = vmatprep.subr.bf16.mxu0 0
  %827 = vmatpush1.bf16.msra.mxu0 0
  %828 = vmatprep.subr.bf16.mxu0 0
  %829 = vmatpush1.bf16.msra.mxu0 0
  %830 = vmatprep.subr.bf16.mxu0 0
  %831 = vmatpush1.bf16.msra.mxu0 0
  %832 = vmatprep.subr.bf16.mxu0 0
  %833 = vmatpush1.bf16.msra.mxu0 0
  %834 = vmatprep.subr.bf16.mxu0 0
  %835 = vmatpush1.bf16.msra.mxu0 0
  %836 = vmatprep.subr.bf16.mxu0 0
  %837 = vmatpush1.bf16.msra.mxu0 0
  %838 = vmatprep.mubr.bf16.mxu0 0
  %839 = vmatmul.mubr.bf16.gmra.mrb[0].mxu0 %v328
  %v840 = vpop.f32.mrb[0].mxu0
  %v841 = vadd.f32 %v190, %v840
  %v842 = vpop.f32.mrb[0].mxu0
  %v843 = vadd.f32 %v192, %v842
  %v844 = vpop.f32.mrb[0].mxu0
  %v845 = vadd.f32 %v194, %v844
  %v846 = vpop.f32.mrb[0].mxu0
  %v847 = vadd.f32 %v196, %v846
  %848 = vmatprep.mubr.bf16.mxu0 0
  %849 = vmatmul.mubr.bf16.gmra.mrb[0].mxu0 %v331
  %v850 = vpop.f32.mrb[0].mxu0
  %v851 = vadd.f32 %v200, %v850
  %v852 = vpop.f32.mrb[0].mxu0
  %v853 = vadd.f32 %v202, %v852
  %v854 = vpop.f32.mrb[0].mxu0
  %v855 = vadd.f32 %v204, %v854
  %v856 = vpop.f32.mrb[0].mxu0
  %v857 = vadd.f32 %v206, %v856
  %858 = vdwg.mxu0
  %v859 = vld [vmem:[%s4] sm:$0xf]
  %v860 = vld [vmem:[%s4 + $0x4] sm:$0x1]
  %vm861 = vcmp.gt.f32.partialorder %v788, 1.0
  %vm862 = vcmp.gt.f32.partialorder %v790, 1.0
  %vm863 = vcmp.gt.f32.partialorder %v841, 1.0
  %vm864 = vcmp.gt.f32.partialorder %v843, 1.0
  %vm865 = vcmp.gt.f32.partialorder %v792, 1.0
  %vm866 = vcmp.gt.f32.partialorder %v794, 1.0
  %vm867 = vcmp.gt.f32.partialorder %v845, 1.0
  %vm868 = vcmp.gt.f32.partialorder %v847, 1.0
  %vm869 = vcmp.gt.f32.partialorder %v798, 1.0
  %vm870 = vcmp.gt.f32.partialorder %v800, 1.0
  %vm871 = vcmp.gt.f32.partialorder %v851, 1.0
  %vm872 = vcmp.gt.f32.partialorder %v853, 1.0
  %vm873 = vcmp.gt.f32.partialorder %v802, 1.0
  %vm874 = vcmp.gt.f32.partialorder %v804, 1.0
  %vm875 = vcmp.gt.f32.partialorder %v855, 1.0
  %vm876 = vcmp.gt.f32.partialorder %v857, 1.0
  %v877 = vsub.f32 %v788, 1.0
  %v878 = vsub.f32 %v790, 1.0
  %v879 = vsub.f32 %v841, 1.0
  %v880 = vsub.f32 %v843, 1.0
  %v881 = vsub.f32 %v792, 1.0
  %v882 = vsub.f32 %v794, 1.0
  %v883 = vsub.f32 %v845, 1.0
  %v884 = vsub.f32 %v847, 1.0
  %v885 = vsub.f32 %v798, 1.0
  %v886 = vsub.f32 %v800, 1.0
  %v887 = vsub.f32 %v851, 1.0
  %v888 = vsub.f32 %v853, 1.0
  %v889 = vsub.f32 %v802, 1.0
  %v890 = vsub.f32 %v804, 1.0
  %v891 = vsub.f32 %v855, 1.0
  %v892 = vsub.f32 %v857, 1.0
  %vm893 = vcmp.lt.f32.partialorder %v788, -1.0
  %vm894 = vcmp.lt.f32.partialorder %v790, -1.0
  %vm895 = vcmp.lt.f32.partialorder %v841, -1.0
  %vm896 = vcmp.lt.f32.partialorder %v843, -1.0
  %vm897 = vcmp.lt.f32.partialorder %v792, -1.0
  %vm898 = vcmp.lt.f32.partialorder %v794, -1.0
  %vm899 = vcmp.lt.f32.partialorder %v845, -1.0
  %vm900 = vcmp.lt.f32.partialorder %v847, -1.0
  %vm901 = vcmp.lt.f32.partialorder %v798, -1.0
  %vm902 = vcmp.lt.f32.partialorder %v800, -1.0
  %vm903 = vcmp.lt.f32.partialorder %v851, -1.0
  %vm904 = vcmp.lt.f32.partialorder %v853, -1.0
  %vm905 = vcmp.lt.f32.partialorder %v802, -1.0
  %vm906 = vcmp.lt.f32.partialorder %v804, -1.0
  %vm907 = vcmp.lt.f32.partialorder %v855, -1.0
  %vm908 = vcmp.lt.f32.partialorder %v857, -1.0
  %v909 = vadd.f32 %v788, 1.0
  %v910 = vadd.f32 %v790, 1.0
  %v911 = vadd.f32 %v841, 1.0
  %v912 = vadd.f32 %v843, 1.0
  %v913 = vadd.f32 %v792, 1.0
  %v914 = vadd.f32 %v794, 1.0
  %v915 = vadd.f32 %v845, 1.0
  %v916 = vadd.f32 %v847, 1.0
  %v917 = vadd.f32 %v798, 1.0
  %v918 = vadd.f32 %v800, 1.0
  %v919 = vadd.f32 %v851, 1.0
  %v920 = vadd.f32 %v853, 1.0
  %v921 = vadd.f32 %v802, 1.0
  %v922 = vadd.f32 %v804, 1.0
  %v923 = vadd.f32 %v855, 1.0
  %v924 = vadd.f32 %v857, 1.0
  %v925 = vsel %vm893, %v909, 0.0
  %v926 = vsel %vm894, %v910, 0.0
  %v927 = vsel %vm895, %v911, 0.0
  %v928 = vsel %vm896, %v912, 0.0
  %v929 = vsel %vm897, %v913, 0.0
  %v930 = vsel %vm898, %v914, 0.0
  %v931 = vsel %vm899, %v915, 0.0
  %v932 = vsel %vm900, %v916, 0.0
  %v933 = vsel %vm901, %v917, 0.0
  %v934 = vsel %vm902, %v918, 0.0
  %v935 = vsel %vm903, %v919, 0.0
  %v936 = vsel %vm904, %v920, 0.0
  %v937 = vsel %vm905, %v921, 0.0
  %v938 = vsel %vm906, %v922, 0.0
  %v939 = vsel %vm907, %v923, 0.0
  %v940 = vsel %vm908, %v924, 0.0
  %v941 = vsel %vm861, %v877, %v925
  %v942 = vsel %vm862, %v878, %v926
  %v943 = vsel %vm863, %v879, %v927
  %v944 = vsel %vm864, %v880, %v928
  %v945 = vsel %vm865, %v881, %v929
  %v946 = vsel %vm866, %v882, %v930
  %v947 = vsel %vm867, %v883, %v931
  %v948 = vsel %vm868, %v884, %v932
  %v949 = vsel %vm869, %v885, %v933
  %v950 = vsel %vm870, %v886, %v934
  %v951 = vsel %vm871, %v887, %v935
  %v952 = vsel %vm872, %v888, %v936
  %v953 = vsel %vm873, %v889, %v937
  %v954 = vsel %vm874, %v890, %v938
  %v955 = vsel %vm875, %v891, %v939
  %v956 = vsel %vm876, %v892, %v940
  %v957 = vpack.c.bf16 %v945, %v941
  %v958 = vpack.c.bf16 %v946, %v942
  %v959 = vpack.c.bf16 %v947, %v943
  %v960 = vpack.c.bf16 %v948, %v944
  %v961 = vpack.c.bf16 %v953, %v949
  %v962 = vpack.c.bf16 %v954, %v950
  %v963 = vpack.c.bf16 %v955, %v951
  %v964 = vpack.c.bf16 %v956, %v952
  %v967 = vunpack.c.l.b16 %v859
  %v968 = vunpack.c.l.b16 %v860
  %v969 = vpack.c.b16 %v968, %v967
  %v971 = vsel %vm326, %v969, 0
  %973 = vmatprep.subr.bf16.mxu0 %v958
  %974 = vmatpush1.bf16.msra.mxu0 %v957
  %975 = vmatprep.subr.bf16.mxu0 %v962
  %976 = vmatpush1.bf16.msra.mxu0 %v961
  %977 = vmatprep.subr.bf16.mxu0 0
  %978 = vmatpush1.bf16.msra.mxu0 0
  %979 = vmatprep.subr.bf16.mxu0 0
  %980 = vmatpush1.bf16.msra.mxu0 0
  %981 = vmatprep.subr.bf16.mxu0 0
  %982 = vmatpush1.bf16.msra.mxu0 0
  %983 = vmatprep.subr.bf16.mxu0 0
  %984 = vmatpush1.bf16.msra.mxu0 0
  %985 = vmatprep.subr.bf16.mxu0 0
  %986 = vmatpush1.bf16.msra.mxu0 0
  %987 = vmatprep.subr.bf16.mxu0 0
  %988 = vmatpush1.bf16.msra.mxu0 0
  %989 = vmatprep.subr.bf16.mxu0 0
  %990 = vmatpush1.bf16.msra.mxu0 0
  %991 = vmatprep.subr.bf16.mxu0 0
  %992 = vmatpush1.bf16.msra.mxu0 0
  %993 = vmatprep.subr.bf16.mxu0 0
  %994 = vmatpush1.bf16.msra.mxu0 0
  %995 = vmatprep.subr.bf16.mxu0 0
  %996 = vmatpush1.bf16.msra.mxu0 0
  %997 = vmatprep.subr.bf16.mxu0 0
  %998 = vmatpush1.bf16.msra.mxu0 0
  %999 = vmatprep.subr.bf16.mxu0 0
  %1000 = vmatpush1.bf16.msra.mxu0 0
  %1001 = vmatprep.subr.bf16.mxu0 0
  %1002 = vmatpush1.bf16.msra.mxu0 0
  %1003 = vmatprep.subr.bf16.mxu0 0
  %1004 = vmatpush1.bf16.msra.mxu0 0
  %1005 = vmatprep.mubr.bf16.mxu0 0
  %1006 = vmatmul.mubr.bf16.gmra.mrb[0].mxu0 %v971
  %v1007 = vpop.f32.mrb[0].mxu0
  %v1008 = vadd.f32 0.0, %v1007
  %v1009 = vpop.f32.mrb[0].mxu0
  %v1010 = vadd.f32 0.0, %v1009
  %v1011 = vpop.f32.mrb[0].mxu0
  %v1012 = vadd.f32 0.0, %v1011
  %v1013 = vpop.f32.mrb[0].mxu0
  %v1014 = vadd.f32 0.0, %v1013
  %1015 = vdwg.mxu0
  %1016 = vmatprep.subr.bf16.mxu0 %v960
  %1017 = vmatpush1.bf16.msra.mxu0 %v959
  %1018 = vmatprep.subr.bf16.mxu0 %v964
  %1019 = vmatpush1.bf16.msra.mxu0 %v963
  %1020 = vmatprep.subr.bf16.mxu0 0
  %1021 = vmatpush1.bf16.msra.mxu0 0
  %1022 = vmatprep.subr.bf16.mxu0 0
  %1023 = vmatpush1.bf16.msra.mxu0 0
  %1024 = vmatprep.subr.bf16.mxu0 0
  %1025 = vmatpush1.bf16.msra.mxu0 0
  %1026 = vmatprep.subr.bf16.mxu0 0
  %1027 = vmatpush1.bf16.msra.mxu0 0
  %1028 = vmatprep.subr.bf16.mxu0 0
  %1029 = vmatpush1.bf16.msra.mxu0 0
  %1030 = vmatprep.subr.bf16.mxu0 0
  %1031 = vmatpush1.bf16.msra.mxu0 0
  %1032 = vmatprep.subr.bf16.mxu0 0
  %1033 = vmatpush1.bf16.msra.mxu0 0
  %1034 = vmatprep.subr.bf16.mxu0 0
  %1035 = vmatpush1.bf16.msra.mxu0 0
  %1036 = vmatprep.subr.bf16.mxu0 0
  %1037 = vmatpush1.bf16.msra.mxu0 0
  %1038 = vmatprep.subr.bf16.mxu0 0
  %1039 = vmatpush1.bf16.msra.mxu0 0
  %1040 = vmatprep.subr.bf16.mxu0 0
  %1041 = vmatpush1.bf16.msra.mxu0 0
  %1042 = vmatprep.subr.bf16.mxu0 0
  %1043 = vmatpush1.bf16.msra.mxu0 0
  %1044 = vmatprep.subr.bf16.mxu0 0
  %1045 = vmatpush1.bf16.msra.mxu0 0
  %1046 = vmatprep.subr.bf16.mxu0 0
  %1047 = vmatpush1.bf16.msra.mxu0 0
  %1048 = vmatprep.mubr.bf16.mxu0 0
  %1049 = vmatmul.mubr.bf16.gmra.mrb[0].mxu0 %v971
  %v1050 = vpop.f32.mrb[0].mxu0
  %v1051 = vadd.f32 0.0, %v1050
  %v1052 = vpop.f32.mrb[0].mxu0
  %v1053 = vadd.f32 0.0, %v1052
  %v1054 = vpop.f32.mrb[0].mxu0
  %v1055 = vadd.f32 0.0, %v1054
  %v1056 = vpop.f32.mrb[0].mxu0
  %v1057 = vadd.f32 0.0, %v1056
  %1058 = vdwg.mxu0
  %1059 = vst [vmem:[%s5] sm:$0xff] %v1008
  %1060 = vst [vmem:[%s5 + $0x8] sm:$0xff] %v1010
  %1061 = vst [vmem:[%s5 + $0x10] sm:$0xff] %v1051
  %1062 = vst [vmem:[%s5 + $0x18] sm:$0xff] %v1053
  %1063 = vst [vmem:[%s5 + $0x20] sm:$0x1] %v1012
  %1064 = vst [vmem:[%s5 + $0x28] sm:$0x1] %v1014
  %1065 = vst [vmem:[%s5 + $0x30] sm:$0x1] %v1055
  %1066 = vst [vmem:[%s5 + $0x38] sm:$0x1] %v1057
  // Predicated region
  $region22: #{scn_dy_forward.3} parent=0 // pred_check
    _
  $region23: #{scn_dy_forward.3} parent=0 // pred_check_branch
    %1068 = sbr.rel (0) target = $region25
  $region24: #{scn_dy_forward.3} parent=0 // pred_region
    _
  $region25: #{scn_dy_forward.3} parent=0 // pred_fallthru
    _
  // Predicated region
  $region26: #{scn_dy_forward.3} parent=0 // pred_check
    _
  $region27: #{scn_dy_forward.3} parent=0 // pred_check_branch
    %1070 = sbr.rel (0) target = $region29
  $region28: #{scn_dy_forward.3} parent=0 // pred_region
    _
  $region29: #{scn_dy_forward.3} parent=0 // pred_fallthru
    _

</llo_original>
